<compile_context>
chip_gen: v6e
topology: v6e:2x2x1
jax: 0.10.0
libtpu: 0.0.40
codegen_flags: <defaults>
</compile_context>

<pallas_src>
import functools

import jax
import jax.numpy as jnp
from jax.experimental import pallas as pl
from jax.experimental.pallas import tpu as pltpu

_LANE = 128
_BF16_SUBLANE = 16   # sublane tile of a packed bf16 vreg


def _round_up(x, m):
    return (x + m - 1) // m * m


def _vmem_capacity_bytes():
    """Physical VMEM per TensorCore (128 MiB on v5e/v6e, 64 MiB on v7x)."""
    try:
        cap = getattr(pltpu.get_tpu_info(), "vmem_capacity_bytes", None)
        if cap:
            return int(cap)
    except Exception:
        pass
    return 64 * 2**20   # conservative (v7x-class) fallback


def _budget_limit_parallel():
    """Returns (batch-tile VMEM budget, vmem_limit ceiling, prefer_multi_step)."""
    cap = _vmem_capacity_bytes()
    if cap >= 96 * 2**20:
        # v5e / v6e: 128 MiB VMEM, single TensorCore -> big tiles, few steps.
        return 88 * 2**20, 100 * 2**20, False
    # v7x-class: 64 MiB per TensorCore, two TensorCores per chip -> keep the
    # working set modest and prefer an even number of "parallel" grid steps.
    return 36 * 2**20, 44 * 2**20, True


def _per_image_vmem_bytes(H, W, C, KP, MP, Ho):
    """Per-image VMEM footprint (lane-padded; in/out blocks double-buffered)."""
    cl = _round_up(C, _LANE)
    in_blk = 2 * H * W * cl * 2          # bf16 input tile x2 (pipelining)
    out_blk = 2 * Ho * W * MP * 2        # bf16 output slab x2 (pipelining)
    z2 = Ho * W * KP * 4                 # fused stage-1/2 result (f32)
    rolled = Ho * W * KP * 4             # one live rolled copy (f32)
    z3 = Ho * W * KP * 4                 # horizontal-tap accumulator (f32)
    z3_b = Ho * W * KP * 2               # bf16 operand for the K->M matmul
    y = Ho * W * MP * 4                  # f32 matmul result before store cast
    return in_blk + out_blk + z2 + rolled + z3 + z3_b + y


def _pick_batch_tile(N, per_image_bytes, budget_bytes, prefer_multi_step):
    """Largest batch tile whose working set fits the VMEM budget.

    On dual-TensorCore chips (v7x) prefer an even number of grid steps so both
    cores stay busy on the 'parallel' axis; on single-TC chips (v5e/v6e) just
    take the largest tile that fits (fewer, larger steps)."""
    divisors = [d for d in range(N, 0, -1) if N % d == 0]
    fitting = [d for d in divisors if d * per_image_bytes <= budget_bytes]
    if not fitting:
        # TODO(synk): add an H-band grid axis (input halo of R-1 rows) as a
        # fallback when even a single image exceeds the VMEM budget.
        return 1
    if not prefer_multi_step or N == 1:
        return fitting[0]
    even = [d for d in fitting if (N // d) % 2 == 0]
    if even:
        return even[0]
    multi = [d for d in fitting if N // d >= 2]
    return multi[0] if multi else fitting[0]


def _cp_conv2d_kernel(x_ref, wr_ref, horiz_ref, last_t_ref, o_ref,
                      *, NB, H, W, C, KP, MP, R, S):
    """One batch tile of the CP pipeline, channels-last, lane dims = k*128.

    x_ref:      (NB, H, W, C)  bf16 activations
    wr_ref:     (R, C, KP)     bf16 fused (1x1 C->K) * (vertical tap r) weights
    horiz_ref:  (S, KP)        bf16 depthwise (1,S) taps
    last_t_ref: (KP, MP)       bf16 1x1 conv K->M, transposed + padded
    o_ref:      (NB*Ho*W, MP)  bf16 flat lane-dense output slab
    """
    Ho = H - R + 1
    Lo = NB * Ho * W

    x = x_ref[...]                                   # (NB, H, W, C) bf16

    # Stages 1+2 fused: z2 = sum_r x[:, r:r+Ho] @ (first * vert[r]).
    # R MXU matmuls accumulating in f32; the H slice is along an un-tiled axis
    # and the (NB,Ho,W,C)->(rows,C) relabel is free because W % 16 == 0.
    z2 = jnp.dot(x[:, 0:Ho].reshape(Lo, C), wr_ref[0],
                 preferred_element_type=jnp.float32)
    for r in range(1, R):
        z2 = z2 + jnp.dot(x[:, r:r + Ho].reshape(Lo, C), wr_ref[r],
                          preferred_element_type=jnp.float32)

    # Stage 3: horizontal (1,S) depthwise conv on the flat (Lo, KP) slab.
    # pltpu.roll(z2, Lo - s, 0) reads row i+s for every output row i on the
    # XLU (no sublane-misaligned slice -> no full-slab relayout copy per tap).
    # Rows whose read wraps an image-row (or slab) boundary only feed output
    # columns >= Wo, which the wrapper discards.
    # TODO(synk): switch the tap arithmetic to bf16 on v6e/v7x once packed
    # sublane rolls are guaranteed to lower; kept f32 (v5e-safe) for now.
    horizf = horiz_ref[...].astype(jnp.float32)      # (S, KP), hoisted upcast
    z3 = horizf[0] * z2
    for s in range(1, S):
        z3 = z3 + horizf[s] * pltpu.roll(z2, Lo - s, 0)

    # Stage 4: pointwise K->M, one bf16 MXU matmul with f32 accumulation, then
    # a single fully-aligned, unmasked, lane-dense store of all Lo rows.
    y = jnp.dot(z3.astype(jnp.bfloat16), last_t_ref[...],
                preferred_element_type=jnp.float32)
    o_ref[...] = y.astype(o_ref.dtype)


def cp_conv2d_nhwc(x_nhwc, first, vert, horiz, last, *, vmem_budget_bytes=None):
    """CP-decomposed Conv2d forward, channels-last end to end.

    x_nhwc: (N, H, W, C) activations.
    first: (C, K)  vert: (R, K)  horiz: (S, K)  last: (M, K)  -- CP factors.
    Returns (N, Ho, Wo, M) with Ho = H-R+1, Wo = W-S+1 (VALID, stride 1, no bias).
    """
    N, H, W, C = x_nhwc.shape
    R, K = vert.shape
    S, _ = horiz.shape
    M, _ = last.shape
    Ho, Wo = H - R + 1, W - S + 1
    assert H >= R and W >= S
    # Activations are bf16: (N,H,W,*) <-> (rows,*) relabels are only free when
    # W is a multiple of the bf16 sublane tile.
    assert W % _BF16_SUBLANE == 0, "W must be a multiple of 16 (bf16 sublane tile)"

    cdt = jnp.bfloat16                       # bf16 I/O + MXU inputs, f32 accum
    x = x_nhwc.astype(cdt)                   # no-op when input is already bf16

    # Lane-pad rank K and out-channels M to multiples of 128: same math (padded
    # channels are zero), full-width MXU matmuls, unmasked vector stores.
    KP = _round_up(K, _LANE)
    MP = _round_up(M, _LANE)

    # Fused stage-1/2 weights W_r[c,k] = first[c,k] * vert[r,k] (product in f32,
    # one bf16 rounding), lane-padded horizontal taps, transposed K->M factor.
    wr = first.astype(jnp.float32)[None] * vert.astype(jnp.float32)[:, None]
    wrp = jnp.zeros((R, C, KP), cdt).at[:, :, :K].set(wr.astype(cdt))
    horizp = jnp.zeros((S, KP), cdt).at[:, :K].set(horiz.astype(cdt))
    last_tp = jnp.zeros((KP, MP), cdt).at[:K, :M].set(last.T.astype(cdt))

    budget, limit_cap, prefer_multi = _budget_limit_parallel()
    if vmem_budget_bytes is not None:
        budget = min(budget, int(vmem_budget_bytes))
    fixed = 2 * (R * C * KP + S * KP + KP * MP) * 2   # double-buffered weights
    per_img = _per_image_vmem_bytes(H, W, C, KP, MP, Ho)
    NB = _pick_batch_tile(N, per_img, budget - fixed, prefer_multi)
    G = N // NB
    Lo = NB * Ho * W
    # Consistent (non-double-counted) limit: working set + weights + slack.
    vmem_limit = int(min(limit_cap,
                         max(32 * 2**20, NB * per_img + fixed + 4 * 2**20)))

    kernel = functools.partial(_cp_conv2d_kernel, NB=NB, H=H, W=W, C=C,
                               KP=KP, MP=MP, R=R, S=S)
    out_flat = pl.pallas_call(
        kernel,
        out_shape=jax.ShapeDtypeStruct((G * Lo, MP), cdt),
        grid_spec=pltpu.PrefetchScalarGridSpec(
            num_scalar_prefetch=0,
            grid=(G,),
            in_specs=[
                # TODO(synk): for tiny C (<<128) this input block is lane-padded
                # to 128 channels; a lane-dense (NB*H, W*C) DMA + on-chip expand
                # would cut input VMEM/DMA bytes by up to 128/C (v5e DMA hazard).
                pl.BlockSpec((NB, H, W, C), lambda g: (g, 0, 0, 0)),
                pl.BlockSpec((R, C, KP), lambda g: (0, 0, 0)),
                pl.BlockSpec((S, KP), lambda g: (0, 0)),
                pl.BlockSpec((KP, MP), lambda g: (0, 0)),
            ],
            out_specs=pl.BlockSpec((Lo, MP), lambda g: (g, 0)),
        ),
        compiler_params=pltpu.CompilerParams(
            dimension_semantics=("parallel",),
            vmem_limit_bytes=vmem_limit,
        ),
    )(x, wrp, horizp, last_tp)

    # Full-width, padded-channel slab -> valid window + real channel count.
    return out_flat.reshape(N, Ho, W, MP)[:, :, :Wo, :M]


def cp_conv2d_nchw(x_nchw, first, vert, horiz, last):
    """PyTorch-layout wrapper (NCHW in / NCHW out), matching CP_Conv2d.forward.
    Prefer cp_conv2d_nhwc end-to-end: each transpose here is a whole-tensor
    HBM round trip outside the kernel."""
    y = cp_conv2d_nhwc(jnp.transpose(x_nchw, (0, 2, 3, 1)),
                       first, vert, horiz, last)
    return jnp.transpose(y, (0, 3, 1, 2))


if __name__ == "__main__":
    # Conv2d(C, M, (R, S), bias=False) decomposed at CP rank K.
    N, C, M, R, S, K = 2, 4, 8, 3, 3, 4
    H = W = 16

    key = jax.random.PRNGKey(0)
    k1, k2, k3, k4, k5 = jax.random.split(key, 5)

    # Deterministic CP factors (parameters of the decomposed layer), bf16 in HBM.
    # TODO(synk): parafac/ALS fitting of an arbitrary _filter (done inside
    # cp_decomp at __init__ time) is parameter setup, not forward compute; the
    # dense reference filter below is reconstructed FROM exact rank-K factors.
    last = (jax.random.normal(k1, (M, K), jnp.float32) * 0.3).astype(jnp.bfloat16)
    first = (jax.random.normal(k2, (C, K), jnp.float32) * 0.3).astype(jnp.bfloat16)
    vert = (jax.random.normal(k3, (R, K), jnp.float32) * 0.3).astype(jnp.bfloat16)
    horiz = (jax.random.normal(k4, (S, K), jnp.float32) * 0.3).astype(jnp.bfloat16)
    x_nhwc = jax.random.normal(k5, (N, H, W, C), jnp.float32).astype(jnp.bfloat16)

    # Channels-last path (no layout transposes anywhere in the hot path).
    y = cp_conv2d_nhwc(x_nhwc, first, vert, horiz, last)
    y = jax.block_until_ready(y)
    assert y.shape == (N, H - R + 1, W - S + 1, M), y.shape

    # Reference: dense Conv2d (bias=False, VALID) in f32 from the same
    # bf16-rounded inputs and factors.
    filt_hwio = jnp.einsum(
        'rk,sk,ck,mk->rscm',
        vert.astype(jnp.float32), horiz.astype(jnp.float32),
        first.astype(jnp.float32), last.astype(jnp.float32))
    y_ref = jax.lax.conv_general_dilated(
        x_nhwc.astype(jnp.float32), filt_hwio, window_strides=(1, 1),
        padding='VALID', dimension_numbers=('NHWC', 'HWIO', 'NHWC'),
        precision=jax.lax.Precision.HIGHEST)
    err = float(jnp.max(jnp.abs(y.astype(jnp.float32) - y_ref)))
    assert jnp.allclose(y.astype(jnp.float32), y_ref, atol=2e-2, rtol=2e-2), err

    # PyTorch-layout entry point (NCHW in/out), matching CP_Conv2d.forward.
    y_nchw = cp_conv2d_nchw(jnp.transpose(x_nhwc, (0, 3, 1, 2)),
                            first, vert, horiz, last)
    y_nchw = jax.block_until_ready(y_nchw)
    assert y_nchw.shape == (N, M, H - R + 1, W - S + 1), y_nchw.shape
    assert jnp.allclose(y_nchw, jnp.transpose(y, (0, 3, 1, 2)))

    print("KERNEL_OK")
</pallas_src>

<mosaic_0001>
module attributes {stable_mosaic.version = 11 : i64} {
  func.func @_cp_conv2d_kernel(%arg0: i32, %arg1: memref<1x16x16x4xbf16, #tpu.memory_space<vmem>>, %arg2: memref<3x4x128xbf16, #tpu.memory_space<vmem>>, %arg3: memref<3x128xbf16, #tpu.memory_space<vmem>>, %arg4: memref<128x128xbf16, #tpu.memory_space<vmem>>, %arg5: memref<224x128xbf16, #tpu.memory_space<vmem>>) attributes {dimension_semantics = [#tpu.dimension_semantics<parallel>], iteration_bounds = array<i64: 2>, scalar_prefetch = 0 : i64, scratch_operands = 0 : i64, tpu.core_type = #tpu.core_type<tc>, window_params = [{transform_indices = @transform_0, window_bounds = array<i64: 1, 16, 16, 4>}, {pipeline_mode = #tpu.pipeline_mode<synchronous>, transform_indices = @transform_1, window_bounds = array<i64: 3, 4, 128>}, {pipeline_mode = #tpu.pipeline_mode<synchronous>, transform_indices = @transform_2, window_bounds = array<i64: 3, 128>}, {pipeline_mode = #tpu.pipeline_mode<synchronous>, transform_indices = @transform_3, window_bounds = array<i64: 128, 128>}, {transform_indices = @transform_4, window_bounds = array<i64: 224, 128>}]} {
    %c0 = arith.constant 0 : index
    %c0_0 = arith.constant 0 : index
    %c0_1 = arith.constant 0 : index
    %c0_2 = arith.constant 0 : index
    %0 = vector.load %arg1[%c0, %c0_0, %c0_1, %c0_2] : memref<1x16x16x4xbf16, #tpu.memory_space<vmem>>, vector<1x16x16x4xbf16>
    %1 = vector.extract_strided_slice %0 {offsets = [0, 0, 0, 0], sizes = [1, 14, 16, 4], strides = [1, 1, 1, 1]} : vector<1x16x16x4xbf16> to vector<1x14x16x4xbf16>
    %2 = vector.shape_cast %1 : vector<1x14x16x4xbf16> to vector<224x4xbf16>
    %c0_3 = arith.constant 0 : index
    %c0_4 = arith.constant 0 : index
    %c0_5 = arith.constant 0 : index
    %3 = vector.load %arg2[%c0_3, %c0_4, %c0_5] : memref<3x4x128xbf16, #tpu.memory_space<vmem>>, vector<1x4x128xbf16>
    %4 = vector.shape_cast %3 : vector<1x4x128xbf16> to vector<4x128xbf16>
    %cst = arith.constant dense<0.000000e+00> : vector<224x128xf32>
    %5 = tpu.matmul %2, %4, %cst {dimension_numbers = #tpu.dot_dimension_numbers<[1], [0], [0], [1], [0, 0, 1, 1], [], []>} : vector<224x4xbf16>, vector<4x128xbf16>, vector<224x128xf32> -> vector<224x128xf32>
    %6 = vector.extract_strided_slice %0 {offsets = [0, 1, 0, 0], sizes = [1, 14, 16, 4], strides = [1, 1, 1, 1]} : vector<1x16x16x4xbf16> to vector<1x14x16x4xbf16>
    %7 = vector.shape_cast %6 : vector<1x14x16x4xbf16> to vector<224x4xbf16>
    %c1 = arith.constant 1 : index
    %c0_6 = arith.constant 0 : index
    %c0_7 = arith.constant 0 : index
    %8 = vector.load %arg2[%c1, %c0_6, %c0_7] : memref<3x4x128xbf16, #tpu.memory_space<vmem>>, vector<1x4x128xbf16>
    %9 = vector.shape_cast %8 : vector<1x4x128xbf16> to vector<4x128xbf16>
    %cst_8 = arith.constant dense<0.000000e+00> : vector<224x128xf32>
    %10 = tpu.matmul %7, %9, %cst_8 {dimension_numbers = #tpu.dot_dimension_numbers<[1], [0], [0], [1], [0, 0, 1, 1], [], []>} : vector<224x4xbf16>, vector<4x128xbf16>, vector<224x128xf32> -> vector<224x128xf32>
    %11 = arith.addf %5, %10 : vector<224x128xf32>
    %12 = vector.extract_strided_slice %0 {offsets = [0, 2, 0, 0], sizes = [1, 14, 16, 4], strides = [1, 1, 1, 1]} : vector<1x16x16x4xbf16> to vector<1x14x16x4xbf16>
    %13 = vector.shape_cast %12 : vector<1x14x16x4xbf16> to vector<224x4xbf16>
    %c2 = arith.constant 2 : index
    %c0_9 = arith.constant 0 : index
    %c0_10 = arith.constant 0 : index
    %14 = vector.load %arg2[%c2, %c0_9, %c0_10] : memref<3x4x128xbf16, #tpu.memory_space<vmem>>, vector<1x4x128xbf16>
    %15 = vector.shape_cast %14 : vector<1x4x128xbf16> to vector<4x128xbf16>
    %cst_11 = arith.constant dense<0.000000e+00> : vector<224x128xf32>
    %16 = tpu.matmul %13, %15, %cst_11 {dimension_numbers = #tpu.dot_dimension_numbers<[1], [0], [0], [1], [0, 0, 1, 1], [], []>} : vector<224x4xbf16>, vector<4x128xbf16>, vector<224x128xf32> -> vector<224x128xf32>
    %17 = arith.addf %11, %16 : vector<224x128xf32>
    %c0_12 = arith.constant 0 : index
    %c0_13 = arith.constant 0 : index
    %18 = vector.load %arg3[%c0_12, %c0_13] : memref<3x128xbf16, #tpu.memory_space<vmem>>, vector<3x128xbf16>
    %19 = arith.extf %18 : vector<3x128xbf16> to vector<3x128xf32>
    %20 = vector.extract_strided_slice %19 {offsets = [0, 0], sizes = [1, 128], strides = [1, 1]} : vector<3x128xf32> to vector<1x128xf32>
    %21 = vector.shape_cast %20 : vector<1x128xf32> to vector<128xf32>
    %22 = vector.shape_cast %21 : vector<128xf32> to vector<1x128xf32>
    %23 = vector.broadcast %22 : vector<1x128xf32> to vector<224x128xf32>
    %24 = arith.mulf %23, %17 : vector<224x128xf32>
    %25 = vector.extract_strided_slice %19 {offsets = [1, 0], sizes = [1, 128], strides = [1, 1]} : vector<3x128xf32> to vector<1x128xf32>
    %26 = vector.shape_cast %25 : vector<1x128xf32> to vector<128xf32>
    %c223_i32 = arith.constant 223 : i32
    %27 = tpu.dynamic_rotate %17 by %c223_i32 dim 0 : vector<224x128xf32>, i32 -> vector<224x128xf32>
    %28 = vector.shape_cast %26 : vector<128xf32> to vector<1x128xf32>
    %29 = vector.broadcast %28 : vector<1x128xf32> to vector<224x128xf32>
    %30 = arith.mulf %29, %27 : vector<224x128xf32>
    %31 = arith.addf %24, %30 : vector<224x128xf32>
    %32 = vector.extract_strided_slice %19 {offsets = [2, 0], sizes = [1, 128], strides = [1, 1]} : vector<3x128xf32> to vector<1x128xf32>
    %33 = vector.shape_cast %32 : vector<1x128xf32> to vector<128xf32>
    %c222_i32 = arith.constant 222 : i32
    %34 = tpu.dynamic_rotate %17 by %c222_i32 dim 0 : vector<224x128xf32>, i32 -> vector<224x128xf32>
    %35 = vector.shape_cast %33 : vector<128xf32> to vector<1x128xf32>
    %36 = vector.broadcast %35 : vector<1x128xf32> to vector<224x128xf32>
    %37 = arith.mulf %36, %34 : vector<224x128xf32>
    %38 = arith.addf %31, %37 : vector<224x128xf32>
    %39 = arith.truncf %38 : vector<224x128xf32> to vector<224x128xbf16>
    %c0_14 = arith.constant 0 : index
    %c0_15 = arith.constant 0 : index
    %40 = vector.load %arg4[%c0_14, %c0_15] : memref<128x128xbf16, #tpu.memory_space<vmem>>, vector<128x128xbf16>
    %cst_16 = arith.constant dense<0.000000e+00> : vector<224x128xf32>
    %41 = tpu.matmul %39, %40, %cst_16 {dimension_numbers = #tpu.dot_dimension_numbers<[1], [0], [0], [1], [0, 0, 1, 1], [], []>} : vector<224x128xbf16>, vector<128x128xbf16>, vector<224x128xf32> -> vector<224x128xf32>
    %42 = arith.truncf %41 : vector<224x128xf32> to vector<224x128xbf16>
    %c0_17 = arith.constant 0 : index
    %c0_18 = arith.constant 0 : index
    %43 = vector.load %arg5[%c0_17, %c0_18] : memref<224x128xbf16, #tpu.memory_space<vmem>>, vector<224x128xbf16>
    tpu.vector_store %arg5[%c0_17, %c0_18], %42 {strides = array<i32>} : memref<224x128xbf16, #tpu.memory_space<vmem>>, vector<224x128xbf16>,
    return
  }
  func.func @transform_0(%arg0: i32) -> (i32, i32, i32, i32) {
    %c0_i32 = arith.constant 0 : i32
    %c0_i32_0 = arith.constant 0 : i32
    %c0_i32_1 = arith.constant 0 : i32
    %c0_i32_2 = arith.constant 0 : i32
    return %arg0, %c0_i32, %c0_i32_0, %c0_i32_1 : i32, i32, i32, i32
  }
  func.func @transform_1(%arg0: i32) -> (i32, i32, i32) {
    %c0_i32 = arith.constant 0 : i32
    %c0_i32_0 = arith.constant 0 : i32
    %c0_i32_1 = arith.constant 0 : i32
    %c0_i32_2 = arith.constant 0 : i32
    return %c0_i32, %c0_i32_0, %c0_i32_1 : i32, i32, i32
  }
  func.func @transform_2(%arg0: i32) -> (i32, i32) {
    %c0_i32 = arith.constant 0 : i32
    %c0_i32_0 = arith.constant 0 : i32
    %c0_i32_1 = arith.constant 0 : i32
    return %c0_i32, %c0_i32_0 : i32, i32
  }
  func.func @transform_3(%arg0: i32) -> (i32, i32) {
    %c0_i32 = arith.constant 0 : i32
    %c0_i32_0 = arith.constant 0 : i32
    %c0_i32_1 = arith.constant 0 : i32
    return %c0_i32, %c0_i32_0 : i32, i32
  }
  func.func @transform_4(%arg0: i32) -> (i32, i32) {
    %c0_i32 = arith.constant 0 : i32
    %c0_i32_0 = arith.constant 0 : i32
    return %arg0, %c0_i32 : i32, i32
  }
}

</mosaic_0001>

<llo_original>
// kernel: tpu_custom_call.1
$region0: #{tpu_custom_call.1}
  #allocation0 [shape = 'u32[]', space=smem, size = 0x4, offset = 0x4, fixed_abs, tag = 'smem constant byte address 0x4 - core index']
  #allocation1 [shape = 'u32[144,128]{1,0:T(1,128)}', space=vmem, size = 0x12000, scoped, tag = 'internal scratch']
  %s0 = inlined_call_operand.vmem [shape: bf16[2,16,16,4], index: 0, kind: input, shape index: {}]
  %s1 = inlined_call_operand.vmem [shape: bf16[3,4,128], index: 1, kind: input, shape index: {}]
  %s2 = inlined_call_operand.vmem [shape: bf16[3,128], index: 2, kind: input, shape index: {}]
  %s3 = inlined_call_operand.vmem [shape: bf16[128,128], index: 3, kind: input, shape index: {}]
  %s4 = inlined_call_operand.hbm [shape: bf16[448,128], index: 4, kind: output, shape index: {}]
  %s5 = sld [smem:[#allocation0]]
  $region49: #{tpu_custom_call.1} parent=0
    _
  %s7 = ssub.s32 1, %s5
  %s8 = scalar_select 0, %s7, %s5
  $region1: #{tpu_custom_call.1} parent=0
    #allocation2 [shape = 'u8[114688]{0}', space=vmem, size = 0x1c000, scoped, tag = 'output window, operand 0']
    #allocation3 [shape = 's32[2]{0}', space=sflag, size = 0x8, scoped, tag = 'scoped memory for tpu_custom_call.1']
    %9 = vsyncpa [#allocation3], 0
    %s10 = scalar_lea.sflag [#allocation3], 1
    %11 = vsyncpa %s10, 0
    loop: start=0, step=1, limit=4
    $region2: #{tpu_custom_call.1} parent=1 // loop_pre_header
      _
    $region3: #{tpu_custom_call.1} parent=1 // loop_header
      %s13 = sphi 0, %s17
      %p14 = scmp.ge.s32.totalorder %s13, 4
      %s23 = sphi 0, %s25
      %s26 = sphi 0, %s23
      %s27 = sphi 0, %s26
      %s43 = sphi 0, %s27
      %s47 = sphi 0, %s47
      %s49 = sphi 0, %s47
      %s50 = sphi 0, %s49
      %s64 = sphi 0, %s50
      %s68 = sphi 0, %s68
      %s70 = sphi 0, %s68
      %s71 = sphi 0, %s70
      %s85 = sphi 0, %s71
      %s89 = sphi 0, %s89
      %s91 = sphi 0, %s89
      %s92 = sphi 0, %s91
      %s106 = sphi 0, %s92
      %s112 = sphi 0, %s114
      %s115 = sphi 0, %s112
      %s116 = sphi 0, %s115
      %s132 = sphi 0, %s116
    $region4: #{tpu_custom_call.1} parent=1 // loop_header_branch
      %16 = sbr.rel (%p14) target = $region8
    $region5: #{tpu_custom_call.1} parent=1 // loop_body
      %s18 = ssub.s32 %s13, 1
      %s19 = ssub.s32 %s13, 2
      %s20 = sadd.s32 %s13, 1
      %s21 = ssub.s32 %s13, %s20
      %p22 = scmp.eq.s32.totalorder %s21, 0
      %s24 = sadd.s32 %s23, 1
      %s25 = scalar_select %p22, %s23, %s24
      %p28 = pneg %p22
      %p29 = scmp.eq.s32.totalorder %s13, 1
      %p30 = por %p28, %p29
      %p31 = scmp.ne.s32.totalorder %s23, %s26
      %p32 = scmp.eq.s32.totalorder %s13, 0
      %p33 = por %p31, %p32
      %p34 = scmp.ne.s32.totalorder %s23, %s26
      %p35 = scmp.eq.s32.totalorder %s18, 1
      %p36 = por %p34, %p35
      %p37 = scmp.ne.s32.totalorder %s26, %s27
      %p38 = scmp.eq.s32.totalorder %s18, 0
      %p39 = por %p37, %p38
      %p40 = scmp.ne.s32.totalorder %s26, %s27
      %p41 = scmp.eq.s32.totalorder %s19, 1
      %p42 = por %p40, %p41
      %p44 = scmp.ne.s32.totalorder %s27, %s43
      %p45 = scmp.eq.s32.totalorder %s19, 0
      %p46 = por %p44, %p45
      %s48 = sadd.s32 %s47, 1
      %p51 = scmp.eq.s32.totalorder %s13, 1
      %p52 = scmp.ne.s32.totalorder %s47, %s49
      %p53 = scmp.eq.s32.totalorder %s13, 0
      %p54 = por %p52, %p53
      %p55 = scmp.ne.s32.totalorder %s47, %s49
      %p56 = scmp.eq.s32.totalorder %s18, 1
      %p57 = por %p55, %p56
      %p58 = scmp.ne.s32.totalorder %s49, %s50
      %p59 = scmp.eq.s32.totalorder %s18, 0
      %p60 = por %p58, %p59
      %p61 = scmp.ne.s32.totalorder %s49, %s50
      %p62 = scmp.eq.s32.totalorder %s19, 1
      %p63 = por %p61, %p62
      %p65 = scmp.ne.s32.totalorder %s50, %s64
      %p66 = scmp.eq.s32.totalorder %s19, 0
      %p67 = por %p65, %p66
      %s69 = sadd.s32 %s68, 1
      %p72 = scmp.eq.s32.totalorder %s13, 1
      %p73 = scmp.ne.s32.totalorder %s68, %s70
      %p74 = scmp.eq.s32.totalorder %s13, 0
      %p75 = por %p73, %p74
      %p76 = scmp.ne.s32.totalorder %s68, %s70
      %p77 = scmp.eq.s32.totalorder %s18, 1
      %p78 = por %p76, %p77
      %p79 = scmp.ne.s32.totalorder %s70, %s71
      %p80 = scmp.eq.s32.totalorder %s18, 0
      %p81 = por %p79, %p80
      %p82 = scmp.ne.s32.totalorder %s70, %s71
      %p83 = scmp.eq.s32.totalorder %s19, 1
      %p84 = por %p82, %p83
      %p86 = scmp.ne.s32.totalorder %s71, %s85
      %p87 = scmp.eq.s32.totalorder %s19, 0
      %p88 = por %p86, %p87
      %s90 = sadd.s32 %s89, 1
      %p93 = scmp.eq.s32.totalorder %s13, 1
      %p94 = scmp.ne.s32.totalorder %s89, %s91
      %p95 = scmp.eq.s32.totalorder %s13, 0
      %p96 = por %p94, %p95
      %p97 = scmp.ne.s32.totalorder %s89, %s91
      %p98 = scmp.eq.s32.totalorder %s18, 1
      %p99 = por %p97, %p98
      %p100 = scmp.ne.s32.totalorder %s91, %s92
      %p101 = scmp.eq.s32.totalorder %s18, 0
      %p102 = por %p100, %p101
      %p103 = scmp.ne.s32.totalorder %s91, %s92
      %p104 = scmp.eq.s32.totalorder %s19, 1
      %p105 = por %p103, %p104
      %p107 = scmp.ne.s32.totalorder %s92, %s106
      %p108 = scmp.eq.s32.totalorder %s19, 0
      %p109 = por %p107, %p108
      %s110 = ssub.s32 %s13, %s20
      %p111 = scmp.eq.s32.totalorder %s110, 0
      %s113 = sadd.s32 %s112, 1
      %s114 = scalar_select %p111, %s112, %s113
      %p117 = pneg %p111
      %p118 = scmp.eq.s32.totalorder %s13, 1
      %p119 = por %p117, %p118
      %p120 = scmp.ne.s32.totalorder %s112, %s115
      %p121 = scmp.eq.s32.totalorder %s13, 0
      %p122 = por %p120, %p121
      %p123 = scmp.ne.s32.totalorder %s112, %s115
      %p124 = scmp.eq.s32.totalorder %s18, 1
      %p125 = por %p123, %p124
      %p126 = scmp.ne.s32.totalorder %s115, %s116
      %p127 = scmp.eq.s32.totalorder %s18, 0
      %p128 = por %p126, %p127
      %p129 = scmp.ne.s32.totalorder %s115, %s116
      %p130 = scmp.eq.s32.totalorder %s19, 1
      %p131 = por %p129, %p130
      %p133 = scmp.ne.s32.totalorder %s116, %s132
      %p134 = scmp.eq.s32.totalorder %s19, 0
      %p135 = por %p133, %p134
      %p136 = scmp.le.s32.totalorder 1, %s13
      %p137 = scmp.lt.s32.totalorder %s13, 3
      %p138 = pnand %p136, %p137
      %p139 = pneg %p138
      // Predicated region
      $region9: #{tpu_custom_call.1} parent=5 // pred_check
        _
      $region10: #{tpu_custom_call.1} parent=5 // pred_check_branch
        %141 = sbr.rel (%p138) target = $region12
      $region11: #{tpu_custom_call.1} parent=5 // pred_region
        %s142 = ssub.s32 %s13, 1
        // Predicated region
        $region13: #{tpu_custom_call.1} parent=11 // pred_check
          %p143 = pneg %p60
        $region14: #{tpu_custom_call.1} parent=11 // pred_check_branch
          %145 = sbr.rel (%p143) target = $region16
        $region15: #{tpu_custom_call.1} parent=11 // pred_region
          _
        $region16: #{tpu_custom_call.1} parent=11 // pred_fallthru
          _
        // Predicated region
        $region17: #{tpu_custom_call.1} parent=11 // pred_check
          %p146 = pneg %p81
        $region18: #{tpu_custom_call.1} parent=11 // pred_check_branch
          %148 = sbr.rel (%p146) target = $region20
        $region19: #{tpu_custom_call.1} parent=11 // pred_region
          _
        $region20: #{tpu_custom_call.1} parent=11 // pred_fallthru
          _
        // Predicated region
        $region21: #{tpu_custom_call.1} parent=11 // pred_check
          %p149 = pneg %p102
        $region22: #{tpu_custom_call.1} parent=11 // pred_check_branch
          %151 = sbr.rel (%p149) target = $region24
        $region23: #{tpu_custom_call.1} parent=11 // pred_region
          _
        $region24: #{tpu_custom_call.1} parent=11 // pred_fallthru
          _
      $region12: #{tpu_custom_call.1} parent=5 // pred_fallthru
        _
      %p152 = scmp.lt.s32.totalorder %s13, 2
      // Predicated region
      $region25: #{tpu_custom_call.1} parent=5 // pred_check
        %p153 = pneg %p152
      $region26: #{tpu_custom_call.1} parent=5 // pred_check_branch
        %155 = sbr.rel (%p153) target = $region28
      $region27: #{tpu_custom_call.1} parent=5 // pred_region
        // Predicated region
        $region29: #{tpu_custom_call.1} parent=27 // pred_check
          %p156 = pneg %p33
        $region30: #{tpu_custom_call.1} parent=27 // pred_check_branch
          %158 = sbr.rel (%p156) target = $region32
        $region31: #{tpu_custom_call.1} parent=27 // pred_region
          %p159 = scmp.lt.s32.totalorder %s13, 1
          %s160 = scalar_select %p159, %s13, 1
          %s161 = smul.addr %s160, 32
          %s162 = smul.addr %s161, 4
          %s163 = scalar_lea.vmem %s0, %s162
        $region32: #{tpu_custom_call.1} parent=27 // pred_fallthru
          _
      $region28: #{tpu_custom_call.1} parent=5 // pred_fallthru
        _
      %p164 = scmp.le.s32.totalorder 1, %s13
      %p165 = scmp.lt.s32.totalorder %s13, 3
      %p166 = pnand %p164, %p165
      %p167 = pneg %p166
      // Predicated region
      $region33: #{tpu_custom_call.1} parent=5 // pred_check
        _
      $region34: #{tpu_custom_call.1} parent=5 // pred_check_branch
        %169 = sbr.rel (%p166) target = $region36
      $region35: #{tpu_custom_call.1} parent=5 // pred_region
        %s170 = ssub.s32 %s13, 1
        %p171 = scmp.lt.s32.totalorder %s18, 1
        %s172 = scalar_select %p171, %s18, 1
        %s173 = smul.addr %s172, 32
        %s174 = smul.addr %s173, 4
        %s175 = scalar_lea.vmem %s0, %s174
        %p176 = pneg %p39
        %p177 = pneg %p36
        %p178 = pneg %p60
        %p179 = pneg %p57
        %p180 = pneg %p81
        %p181 = pneg %p78
        %p182 = pneg %p102
        %p183 = pneg %p99
        %p184 = pneg %p128
        %p185 = pneg %p125
        %s186 = sand.u32 %s115, 1
        %s187 = scalar_lea.sflag [#allocation3], %s186
        %s188 = sand.u32 %s115, 1
        %s189 = smul.addr %s188, 112
        %s190 = scalar_lea.vmem [#allocation2], %s189
        %p191 = scmp.lt.s32.totalorder %s18, 1
        %s192 = scalar_select %p191, %s18, 1
        %s193 = smul.addr %s192, 32
        %s194 = smul.addr %s193, 4
        %s195 = scalar_lea.vmem %s0, %s194
        %s196 = smul.u32 28, %s18
        %v198 = vld [vmem:[%s195] sm:$0xf]
        %v199 = vld [vmem:[%s195 + $0x4] sm:$0xf]
        %v200 = vld [vmem:[%s195 + $0x8] sm:$0xf]
        %v201 = vld [vmem:[%s195 + $0xc] sm:$0xf]
        %v202 = vld [vmem:[%s195 + $0x10] sm:$0xf]
        %v203 = vld [vmem:[%s195 + $0x14] sm:$0xf]
        %v204 = vld [vmem:[%s195 + $0x18] sm:$0xf]
        %v205 = vld [vmem:[%s195 + $0x1c] sm:$0xf]
        %v206 = vld [vmem:[%s195 + $0x20] sm:$0xf]
        %v207 = vld [vmem:[%s195 + $0x24] sm:$0xf]
        %v208 = vld [vmem:[%s195 + $0x28] sm:$0xf]
        %v209 = vld [vmem:[%s195 + $0x2c] sm:$0xf]
        %v210 = vld [vmem:[%s195 + $0x30] sm:$0xf]
        %v211 = vld [vmem:[%s195 + $0x34] sm:$0xf]
        %v212 = vld [vmem:[%s195 + $0x38] sm:$0xf]
        %v213 = vld [vmem:[%s195 + $0x3c] sm:$0xf]
        %v214 = vld [vmem:[%s195 + $0x40] sm:$0xf]
        %v215 = vld [vmem:[%s195 + $0x44] sm:$0xf]
        %v216 = vld [vmem:[%s195 + $0x48] sm:$0xf]
        %v217 = vld [vmem:[%s195 + $0x4c] sm:$0xf]
        %v218 = vld [vmem:[%s195 + $0x50] sm:$0xf]
        %v219 = vld [vmem:[%s195 + $0x54] sm:$0xf]
        %v220 = vld [vmem:[%s195 + $0x58] sm:$0xf]
        %v221 = vld [vmem:[%s195 + $0x5c] sm:$0xf]
        %v222 = vld [vmem:[%s195 + $0x60] sm:$0xf]
        %v223 = vld [vmem:[%s195 + $0x64] sm:$0xf]
        %v224 = vld [vmem:[%s195 + $0x68] sm:$0xf]
        %v225 = vld [vmem:[%s195 + $0x6c] sm:$0xf]
        %v226 = vld [vmem:[%s195 + $0x70] sm:$0xf]
        %v227 = vld [vmem:[%s195 + $0x74] sm:$0xf]
        %v228 = vld [vmem:[%s195 + $0x78] sm:$0xf]
        %v229 = vld [vmem:[%s195 + $0x7c] sm:$0xf]
        %v230 = vld [vmem:[%s1] sm:$0x3]
        %s231 = scalar_lea.vmem %s1, 2
        %v232 = vld [vmem:[%s231] sm:$0x3]
        %v261 = vunpack.c.l.b16 %v200
        %v262 = vunpack.c.l.b16 %v201
        %v263 = vunpack.c.l.b16 %v202
        %v264 = vunpack.c.l.b16 %v203
        %v265 = vunpack.c.l.b16 %v204
        %v266 = vunpack.c.l.b16 %v205
        %v267 = vunpack.c.l.b16 %v206
        %v268 = vunpack.c.l.b16 %v207
        %v269 = vunpack.c.l.b16 %v208
        %v270 = vunpack.c.l.b16 %v209
        %v271 = vunpack.c.l.b16 %v210
        %v272 = vunpack.c.l.b16 %v211
        %v273 = vunpack.c.l.b16 %v212
        %v274 = vunpack.c.l.b16 %v213
        %v275 = vunpack.c.l.b16 %v214
        %v276 = vunpack.c.l.b16 %v215
        %v277 = vunpack.c.l.b16 %v216
        %v278 = vunpack.c.l.b16 %v217
        %v279 = vunpack.c.l.b16 %v218
        %v280 = vunpack.c.l.b16 %v219
        %v281 = vunpack.c.l.b16 %v220
        %v282 = vunpack.c.l.b16 %v221
        %v283 = vunpack.c.l.b16 %v222
        %v284 = vunpack.c.l.b16 %v223
        %v285 = vunpack.c.l.b16 %v224
        %v286 = vunpack.c.l.b16 %v225
        %v287 = vunpack.c.l.b16 %v226
        %v288 = vunpack.c.l.b16 %v227
        %v289 = vpack.c.b16 %v262, %v261
        %v290 = vpack.c.b16 %v264, %v263
        %v291 = vpack.c.b16 %v266, %v265
        %v292 = vpack.c.b16 %v268, %v267
        %v293 = vpack.c.b16 %v270, %v269
        %v294 = vpack.c.b16 %v272, %v271
        %v295 = vpack.c.b16 %v274, %v273
        %v296 = vpack.c.b16 %v276, %v275
        %v297 = vpack.c.b16 %v278, %v277
        %v298 = vpack.c.b16 %v280, %v279
        %v299 = vpack.c.b16 %v282, %v281
        %v300 = vpack.c.b16 %v284, %v283
        %v301 = vpack.c.b16 %v286, %v285
        %v302 = vpack.c.b16 %v288, %v287
        %vm303 = vcmask 31744
        %v305 = vsel %vm303, %v289, 0
        %v308 = vsel %vm303, %v290, 0
        %v311 = vsel %vm303, %v291, 0
        %v314 = vsel %vm303, %v292, 0
        %v317 = vsel %vm303, %v293, 0
        %v320 = vsel %vm303, %v294, 0
        %v323 = vsel %vm303, %v295, 0
        %v326 = vsel %vm303, %v296, 0
        %v329 = vsel %vm303, %v297, 0
        %v332 = vsel %vm303, %v298, 0
        %v335 = vsel %vm303, %v299, 0
        %v338 = vsel %vm303, %v300, 0
        %v341 = vsel %vm303, %v301, 0
        %v344 = vsel %vm303, %v302, 0
        %vm346 = vcmask 1041408
        %v348 = vsel %vm346, %v232, 0
        %350 = vmatprep.subr.bf16.mxu0 0
        %351 = vmatpush1.bf16.msra.mxu0 0
        %352 = vmatprep.subr.bf16.mxu0 0
        %353 = vmatpush1.bf16.msra.mxu0 0
        %354 = vmatprep.subr.bf16.mxu0 0
        %355 = vmatpush1.bf16.msra.mxu0 0
        %356 = vmatprep.subr.bf16.mxu0 0
        %357 = vmatpush1.bf16.msra.mxu0 0
        %358 = vmatprep.subr.bf16.mxu0 0
        %359 = vmatpush1.bf16.msra.mxu0 0
        %360 = vmatprep.subr.bf16.mxu0 0
        %361 = vmatpush1.bf16.msra.mxu0 0
        %362 = vmatprep.subr.bf16.mxu0 0
        %363 = vmatpush1.bf16.msra.mxu0 0
        %364 = vmatprep.subr.bf16.mxu0 0
        %365 = vmatpush1.bf16.msra.mxu0 %v348
        %366 = vmatprep.subr.bf16.mxu0 0
        %367 = vmatpush2.bf16.msra.mxu0 0
        %368 = vmatprep.subr.bf16.mxu0 0
        %369 = vmatpush2.bf16.msra.mxu0 0
        %370 = vmatprep.subr.bf16.mxu0 0
        %371 = vmatpush2.bf16.msra.mxu0 0
        %372 = vmatprep.subr.bf16.mxu0 0
        %373 = vmatpush2.bf16.msra.mxu0 0
        %374 = vmatprep.subr.bf16.mxu0 0
        %375 = vmatpush2.bf16.msra.mxu0 0
        %376 = vmatprep.subr.bf16.mxu0 0
        %377 = vmatpush2.bf16.msra.mxu0 0
        %378 = vmatprep.subr.bf16.mxu0 0
        %379 = vmatpush2.bf16.msra.mxu0 0
        %380 = vmatprep.subr.bf16.mxu0 0
        %381 = vmatpush2.bf16.msra.mxu0 0
        %382 = vmatprep.mubr.bf16.mxu0 0
        %383 = vmatmul.mubr.bf16.gmra.mxu0 %v305
        %v384 = vpop.f32.mrf.mxu0
        %v385 = vadd.f32 0.0, %v384
        %v386 = vpop.f32.mrf.mxu0
        %v387 = vpop.f32.mrf.mxu0
        %v388 = vadd.f32 0.0, %v387
        %v389 = vpop.f32.mrf.mxu0
        %390 = vmatprep.mubr.bf16.mxu0 0
        %391 = vmatmul.mubr.bf16.gmra.mxu0 %v308
        %v392 = vpop.f32.mrf.mxu0
        %v393 = vadd.f32 0.0, %v392
        %v394 = vpop.f32.mrf.mxu0
        %v395 = vpop.f32.mrf.mxu0
        %v396 = vadd.f32 0.0, %v395
        %v397 = vpop.f32.mrf.mxu0
        %398 = vmatprep.mubr.bf16.mxu0 0
        %399 = vmatmul.mubr.bf16.gmra.mxu0 %v311
        %v400 = vpop.f32.mrf.mxu0
        %v401 = vadd.f32 0.0, %v400
        %v402 = vpop.f32.mrf.mxu0
        %v403 = vpop.f32.mrf.mxu0
        %v404 = vadd.f32 0.0, %v403
        %v405 = vpop.f32.mrf.mxu0
        %406 = vmatprep.mubr.bf16.mxu0 0
        %407 = vmatmul.mubr.bf16.gmra.mxu0 %v314
        %v408 = vpop.f32.mrf.mxu0
        %v409 = vadd.f32 0.0, %v408
        %v410 = vpop.f32.mrf.mxu0
        %v411 = vpop.f32.mrf.mxu0
        %v412 = vadd.f32 0.0, %v411
        %v413 = vpop.f32.mrf.mxu0
        %414 = vmatprep.mubr.bf16.mxu0 0
        %415 = vmatmul.mubr.bf16.gmra.mxu0 %v317
        %v416 = vpop.f32.mrf.mxu0
        %v417 = vadd.f32 0.0, %v416
        %v418 = vpop.f32.mrf.mxu0
        %v419 = vpop.f32.mrf.mxu0
        %v420 = vadd.f32 0.0, %v419
        %v421 = vpop.f32.mrf.mxu0
        %422 = vmatprep.mubr.bf16.mxu0 0
        %423 = vmatmul.mubr.bf16.gmra.mxu0 %v320
        %v424 = vpop.f32.mrf.mxu0
        %v425 = vadd.f32 0.0, %v424
        %v426 = vpop.f32.mrf.mxu0
        %v427 = vpop.f32.mrf.mxu0
        %v428 = vadd.f32 0.0, %v427
        %v429 = vpop.f32.mrf.mxu0
        %430 = vmatprep.mubr.bf16.mxu0 0
        %431 = vmatmul.mubr.bf16.gmra.mxu0 %v323
        %v432 = vpop.f32.mrf.mxu0
        %v433 = vadd.f32 0.0, %v432
        %v434 = vpop.f32.mrf.mxu0
        %v435 = vpop.f32.mrf.mxu0
        %v436 = vadd.f32 0.0, %v435
        %v437 = vpop.f32.mrf.mxu0
        %438 = vmatprep.mubr.bf16.mxu0 0
        %439 = vmatmul.mubr.bf16.gmra.mxu0 %v326
        %v440 = vpop.f32.mrf.mxu0
        %v441 = vadd.f32 0.0, %v440
        %v442 = vpop.f32.mrf.mxu0
        %v443 = vpop.f32.mrf.mxu0
        %v444 = vadd.f32 0.0, %v443
        %v445 = vpop.f32.mrf.mxu0
        %446 = vmatprep.mubr.bf16.mxu0 0
        %447 = vmatmul.mubr.bf16.gmra.mxu0 %v329
        %v448 = vpop.f32.mrf.mxu0
        %v449 = vadd.f32 0.0, %v448
        %v450 = vpop.f32.mrf.mxu0
        %v451 = vpop.f32.mrf.mxu0
        %v452 = vadd.f32 0.0, %v451
        %v453 = vpop.f32.mrf.mxu0
        %454 = vmatprep.mubr.bf16.mxu0 0
        %455 = vmatmul.mubr.bf16.gmra.mxu0 %v332
        %v456 = vpop.f32.mrf.mxu0
        %v457 = vadd.f32 0.0, %v456
        %v458 = vpop.f32.mrf.mxu0
        %v459 = vpop.f32.mrf.mxu0
        %v460 = vadd.f32 0.0, %v459
        %v461 = vpop.f32.mrf.mxu0
        %462 = vmatprep.mubr.bf16.mxu0 0
        %463 = vmatmul.mubr.bf16.gmra.mxu0 %v335
        %v464 = vpop.f32.mrf.mxu0
        %v465 = vadd.f32 0.0, %v464
        %v466 = vpop.f32.mrf.mxu0
        %v467 = vpop.f32.mrf.mxu0
        %v468 = vadd.f32 0.0, %v467
        %v469 = vpop.f32.mrf.mxu0
        %470 = vmatprep.mubr.bf16.mxu0 0
        %471 = vmatmul.mubr.bf16.gmra.mxu0 %v338
        %v472 = vpop.f32.mrf.mxu0
        %v473 = vadd.f32 0.0, %v472
        %v474 = vpop.f32.mrf.mxu0
        %v475 = vpop.f32.mrf.mxu0
        %v476 = vadd.f32 0.0, %v475
        %v477 = vpop.f32.mrf.mxu0
        %478 = vmatprep.mubr.bf16.mxu0 0
        %479 = vmatmul.mubr.bf16.gmra.mxu0 %v341
        %v480 = vpop.f32.mrf.mxu0
        %v481 = vadd.f32 0.0, %v480
        %v482 = vpop.f32.mrf.mxu0
        %v483 = vpop.f32.mrf.mxu0
        %v484 = vadd.f32 0.0, %v483
        %v485 = vpop.f32.mrf.mxu0
        %486 = vmatprep.mubr.bf16.mxu0 0
        %487 = vmatmul.mubr.bf16.gmra.mxu0 %v344
        %v488 = vpop.f32.mrf.mxu0
        %v489 = vadd.f32 0.0, %v488
        %v490 = vpop.f32.mrf.mxu0
        %v491 = vpop.f32.mrf.mxu0
        %v492 = vadd.f32 0.0, %v491
        %v493 = vpop.f32.mrf.mxu0
        %494 = vdwg.mxu0
        %v497 = vunpack.c.l.b16 %v198
        %v498 = vunpack.c.l.b16 %v199
        %v499 = vpack.c.b16 %v498, %v497
        %v501 = vsel %vm303, %v499, 0
        %v504 = vsel %vm346, %v230, 0
        %506 = vmatprep.subr.bf16.mxu0 0
        %507 = vmatpush1.bf16.msra.mxu0 0
        %508 = vmatprep.subr.bf16.mxu0 0
        %509 = vmatpush1.bf16.msra.mxu0 0
        %510 = vmatprep.subr.bf16.mxu0 0
        %511 = vmatpush1.bf16.msra.mxu0 0
        %512 = vmatprep.subr.bf16.mxu0 0
        %513 = vmatpush1.bf16.msra.mxu0 0
        %514 = vmatprep.subr.bf16.mxu0 0
        %515 = vmatpush1.bf16.msra.mxu0 0
        %516 = vmatprep.subr.bf16.mxu0 0
        %517 = vmatpush1.bf16.msra.mxu0 0
        %518 = vmatprep.subr.bf16.mxu0 0
        %519 = vmatpush1.bf16.msra.mxu0 0
        %520 = vmatprep.subr.bf16.mxu0 0
        %521 = vmatpush1.bf16.msra.mxu0 %v504
        %522 = vmatprep.subr.bf16.mxu0 0
        %523 = vmatpush2.bf16.msra.mxu0 0
        %524 = vmatprep.subr.bf16.mxu0 0
        %525 = vmatpush2.bf16.msra.mxu0 0
        %526 = vmatprep.subr.bf16.mxu0 0
        %527 = vmatpush2.bf16.msra.mxu0 0
        %528 = vmatprep.subr.bf16.mxu0 0
        %529 = vmatpush2.bf16.msra.mxu0 0
        %530 = vmatprep.subr.bf16.mxu0 0
        %531 = vmatpush2.bf16.msra.mxu0 0
        %532 = vmatprep.subr.bf16.mxu0 0
        %533 = vmatpush2.bf16.msra.mxu0 0
        %534 = vmatprep.subr.bf16.mxu0 0
        %535 = vmatpush2.bf16.msra.mxu0 0
        %536 = vmatprep.subr.bf16.mxu0 0
        %537 = vmatpush2.bf16.msra.mxu0 0
        %538 = vmatprep.mubr.bf16.mxu0 0
        %539 = vmatmul.mubr.bf16.gmra.mxu0 %v501
        %v540 = vpop.f32.mrf.mxu0
        %v541 = vadd.f32 %v385, %v540
        %v542 = vpop.f32.mrf.mxu0
        %v543 = vpop.f32.mrf.mxu0
        %v544 = vadd.f32 %v388, %v543
        %v545 = vpop.f32.mrf.mxu0
        %546 = vmatprep.mubr.bf16.mxu0 0
        %547 = vmatmul.mubr.bf16.gmra.mxu0 %v305
        %v548 = vpop.f32.mrf.mxu0
        %v549 = vadd.f32 %v393, %v548
        %v550 = vpop.f32.mrf.mxu0
        %v551 = vpop.f32.mrf.mxu0
        %v552 = vadd.f32 %v396, %v551
        %v553 = vpop.f32.mrf.mxu0
        %554 = vmatprep.mubr.bf16.mxu0 0
        %555 = vmatmul.mubr.bf16.gmra.mxu0 %v308
        %v556 = vpop.f32.mrf.mxu0
        %v557 = vadd.f32 %v401, %v556
        %v558 = vpop.f32.mrf.mxu0
        %v559 = vpop.f32.mrf.mxu0
        %v560 = vadd.f32 %v404, %v559
        %v561 = vpop.f32.mrf.mxu0
        %562 = vmatprep.mubr.bf16.mxu0 0
        %563 = vmatmul.mubr.bf16.gmra.mxu0 %v311
        %v564 = vpop.f32.mrf.mxu0
        %v565 = vadd.f32 %v409, %v564
        %v566 = vpop.f32.mrf.mxu0
        %v567 = vpop.f32.mrf.mxu0
        %v568 = vadd.f32 %v412, %v567
        %v569 = vpop.f32.mrf.mxu0
        %570 = vmatprep.mubr.bf16.mxu0 0
        %571 = vmatmul.mubr.bf16.gmra.mxu0 %v314
        %v572 = vpop.f32.mrf.mxu0
        %v573 = vadd.f32 %v417, %v572
        %v574 = vpop.f32.mrf.mxu0
        %v575 = vpop.f32.mrf.mxu0
        %v576 = vadd.f32 %v420, %v575
        %v577 = vpop.f32.mrf.mxu0
        %578 = vmatprep.mubr.bf16.mxu0 0
        %579 = vmatmul.mubr.bf16.gmra.mxu0 %v317
        %v580 = vpop.f32.mrf.mxu0
        %v581 = vadd.f32 %v425, %v580
        %v582 = vpop.f32.mrf.mxu0
        %v583 = vpop.f32.mrf.mxu0
        %v584 = vadd.f32 %v428, %v583
        %v585 = vpop.f32.mrf.mxu0
        %586 = vmatprep.mubr.bf16.mxu0 0
        %587 = vmatmul.mubr.bf16.gmra.mxu0 %v320
        %v588 = vpop.f32.mrf.mxu0
        %v589 = vadd.f32 %v433, %v588
        %v590 = vpop.f32.mrf.mxu0
        %v591 = vpop.f32.mrf.mxu0
        %v592 = vadd.f32 %v436, %v591
        %v593 = vpop.f32.mrf.mxu0
        %594 = vmatprep.mubr.bf16.mxu0 0
        %595 = vmatmul.mubr.bf16.gmra.mxu0 %v323
        %v596 = vpop.f32.mrf.mxu0
        %v597 = vadd.f32 %v441, %v596
        %v598 = vpop.f32.mrf.mxu0
        %v599 = vpop.f32.mrf.mxu0
        %v600 = vadd.f32 %v444, %v599
        %v601 = vpop.f32.mrf.mxu0
        %602 = vmatprep.mubr.bf16.mxu0 0
        %603 = vmatmul.mubr.bf16.gmra.mxu0 %v326
        %v604 = vpop.f32.mrf.mxu0
        %v605 = vadd.f32 %v449, %v604
        %v606 = vpop.f32.mrf.mxu0
        %v607 = vpop.f32.mrf.mxu0
        %v608 = vadd.f32 %v452, %v607
        %v609 = vpop.f32.mrf.mxu0
        %610 = vmatprep.mubr.bf16.mxu0 0
        %611 = vmatmul.mubr.bf16.gmra.mxu0 %v329
        %v612 = vpop.f32.mrf.mxu0
        %v613 = vadd.f32 %v457, %v612
        %v614 = vpop.f32.mrf.mxu0
        %v615 = vpop.f32.mrf.mxu0
        %v616 = vadd.f32 %v460, %v615
        %v617 = vpop.f32.mrf.mxu0
        %618 = vmatprep.mubr.bf16.mxu0 0
        %619 = vmatmul.mubr.bf16.gmra.mxu0 %v332
        %v620 = vpop.f32.mrf.mxu0
        %v621 = vadd.f32 %v465, %v620
        %v622 = vpop.f32.mrf.mxu0
        %v623 = vpop.f32.mrf.mxu0
        %v624 = vadd.f32 %v468, %v623
        %v625 = vpop.f32.mrf.mxu0
        %626 = vmatprep.mubr.bf16.mxu0 0
        %627 = vmatmul.mubr.bf16.gmra.mxu0 %v335
        %v628 = vpop.f32.mrf.mxu0
        %v629 = vadd.f32 %v473, %v628
        %v630 = vpop.f32.mrf.mxu0
        %v631 = vpop.f32.mrf.mxu0
        %v632 = vadd.f32 %v476, %v631
        %v633 = vpop.f32.mrf.mxu0
        %634 = vmatprep.mubr.bf16.mxu0 0
        %635 = vmatmul.mubr.bf16.gmra.mxu0 %v338
        %v636 = vpop.f32.mrf.mxu0
        %v637 = vadd.f32 %v481, %v636
        %v638 = vpop.f32.mrf.mxu0
        %v639 = vpop.f32.mrf.mxu0
        %v640 = vadd.f32 %v484, %v639
        %v641 = vpop.f32.mrf.mxu0
        %642 = vmatprep.mubr.bf16.mxu0 0
        %643 = vmatmul.mubr.bf16.gmra.mxu0 %v341
        %v644 = vpop.f32.mrf.mxu0
        %v645 = vadd.f32 %v489, %v644
        %v646 = vpop.f32.mrf.mxu0
        %v647 = vpop.f32.mrf.mxu0
        %v648 = vadd.f32 %v492, %v647
        %v649 = vpop.f32.mrf.mxu0
        %650 = vdwg.mxu0
        %s651 = scalar_lea.vmem %s1, 4
        %v652 = vld [vmem:[%s651] sm:$0x3]
        %v655 = vunpack.c.l.b16 %v228
        %v656 = vunpack.c.l.b16 %v229
        %v657 = vpack.c.b16 %v656, %v655
        %v659 = vsel %vm303, %v657, 0
        %v662 = vsel %vm346, %v652, 0
        %664 = vmatprep.subr.bf16.mxu0 0
        %665 = vmatpush1.bf16.msra.mxu0 0
        %666 = vmatprep.subr.bf16.mxu0 0
        %667 = vmatpush1.bf16.msra.mxu0 0
        %668 = vmatprep.subr.bf16.mxu0 0
        %669 = vmatpush1.bf16.msra.mxu0 0
        %670 = vmatprep.subr.bf16.mxu0 0
        %671 = vmatpush1.bf16.msra.mxu0 0
        %672 = vmatprep.subr.bf16.mxu0 0
        %673 = vmatpush1.bf16.msra.mxu0 0
        %674 = vmatprep.subr.bf16.mxu0 0
        %675 = vmatpush1.bf16.msra.mxu0 0
        %676 = vmatprep.subr.bf16.mxu0 0
        %677 = vmatpush1.bf16.msra.mxu0 0
        %678 = vmatprep.subr.bf16.mxu0 0
        %679 = vmatpush1.bf16.msra.mxu0 %v662
        %680 = vmatprep.subr.bf16.mxu0 0
        %681 = vmatpush2.bf16.msra.mxu0 0
        %682 = vmatprep.subr.bf16.mxu0 0
        %683 = vmatpush2.bf16.msra.mxu0 0
        %684 = vmatprep.subr.bf16.mxu0 0
        %685 = vmatpush2.bf16.msra.mxu0 0
        %686 = vmatprep.subr.bf16.mxu0 0
        %687 = vmatpush2.bf16.msra.mxu0 0
        %688 = vmatprep.subr.bf16.mxu0 0
        %689 = vmatpush2.bf16.msra.mxu0 0
        %690 = vmatprep.subr.bf16.mxu0 0
        %691 = vmatpush2.bf16.msra.mxu0 0
        %692 = vmatprep.subr.bf16.mxu0 0
        %693 = vmatpush2.bf16.msra.mxu0 0
        %694 = vmatprep.subr.bf16.mxu0 0
        %695 = vmatpush2.bf16.msra.mxu0 0
        %696 = vmatprep.mubr.bf16.mxu0 0
        %697 = vmatmul.mubr.bf16.gmra.mxu0 %v308
        %v698 = vpop.f32.mrf.mxu0
        %v699 = vadd.f32 0.0, %v698
        %v700 = vpop.f32.mrf.mxu0
        %v701 = vpop.f32.mrf.mxu0
        %v702 = vadd.f32 0.0, %v701
        %v703 = vpop.f32.mrf.mxu0
        %704 = vmatprep.mubr.bf16.mxu0 0
        %705 = vmatmul.mubr.bf16.gmra.mxu0 %v311
        %v706 = vpop.f32.mrf.mxu0
        %v707 = vadd.f32 0.0, %v706
        %v708 = vpop.f32.mrf.mxu0
        %v709 = vpop.f32.mrf.mxu0
        %v710 = vadd.f32 0.0, %v709
        %v711 = vpop.f32.mrf.mxu0
        %712 = vmatprep.mubr.bf16.mxu0 0
        %713 = vmatmul.mubr.bf16.gmra.mxu0 %v314
        %v714 = vpop.f32.mrf.mxu0
        %v715 = vadd.f32 0.0, %v714
        %v716 = vpop.f32.mrf.mxu0
        %v717 = vpop.f32.mrf.mxu0
        %v718 = vadd.f32 0.0, %v717
        %v719 = vpop.f32.mrf.mxu0
        %720 = vmatprep.mubr.bf16.mxu0 0
        %721 = vmatmul.mubr.bf16.gmra.mxu0 %v317
        %v722 = vpop.f32.mrf.mxu0
        %v723 = vadd.f32 0.0, %v722
        %v724 = vpop.f32.mrf.mxu0
        %v725 = vpop.f32.mrf.mxu0
        %v726 = vadd.f32 0.0, %v725
        %v727 = vpop.f32.mrf.mxu0
        %728 = vmatprep.mubr.bf16.mxu0 0
        %729 = vmatmul.mubr.bf16.gmra.mxu0 %v320
        %v730 = vpop.f32.mrf.mxu0
        %v731 = vadd.f32 0.0, %v730
        %v732 = vpop.f32.mrf.mxu0
        %v733 = vpop.f32.mrf.mxu0
        %v734 = vadd.f32 0.0, %v733
        %v735 = vpop.f32.mrf.mxu0
        %736 = vmatprep.mubr.bf16.mxu0 0
        %737 = vmatmul.mubr.bf16.gmra.mxu0 %v323
        %v738 = vpop.f32.mrf.mxu0
        %v739 = vadd.f32 0.0, %v738
        %v740 = vpop.f32.mrf.mxu0
        %v741 = vpop.f32.mrf.mxu0
        %v742 = vadd.f32 0.0, %v741
        %v743 = vpop.f32.mrf.mxu0
        %744 = vmatprep.mubr.bf16.mxu0 0
        %745 = vmatmul.mubr.bf16.gmra.mxu0 %v326
        %v746 = vpop.f32.mrf.mxu0
        %v747 = vadd.f32 0.0, %v746
        %v748 = vpop.f32.mrf.mxu0
        %v749 = vpop.f32.mrf.mxu0
        %v750 = vadd.f32 0.0, %v749
        %v751 = vpop.f32.mrf.mxu0
        %752 = vmatprep.mubr.bf16.mxu0 0
        %753 = vmatmul.mubr.bf16.gmra.mxu0 %v329
        %v754 = vpop.f32.mrf.mxu0
        %v755 = vadd.f32 0.0, %v754
        %v756 = vpop.f32.mrf.mxu0
        %v757 = vpop.f32.mrf.mxu0
        %v758 = vadd.f32 0.0, %v757
        %v759 = vpop.f32.mrf.mxu0
        %760 = vmatprep.mubr.bf16.mxu0 0
        %761 = vmatmul.mubr.bf16.gmra.mxu0 %v332
        %v762 = vpop.f32.mrf.mxu0
        %v763 = vadd.f32 0.0, %v762
        %v764 = vpop.f32.mrf.mxu0
        %v765 = vpop.f32.mrf.mxu0
        %v766 = vadd.f32 0.0, %v765
        %v767 = vpop.f32.mrf.mxu0
        %768 = vmatprep.mubr.bf16.mxu0 0
        %769 = vmatmul.mubr.bf16.gmra.mxu0 %v335
        %v770 = vpop.f32.mrf.mxu0
        %v771 = vadd.f32 0.0, %v770
        %v772 = vpop.f32.mrf.mxu0
        %v773 = vpop.f32.mrf.mxu0
        %v774 = vadd.f32 0.0, %v773
        %v775 = vpop.f32.mrf.mxu0
        %776 = vmatprep.mubr.bf16.mxu0 0
        %777 = vmatmul.mubr.bf16.gmra.mxu0 %v338
        %v778 = vpop.f32.mrf.mxu0
        %v779 = vadd.f32 0.0, %v778
        %v780 = vpop.f32.mrf.mxu0
        %v781 = vpop.f32.mrf.mxu0
        %v782 = vadd.f32 0.0, %v781
        %v783 = vpop.f32.mrf.mxu0
        %784 = vmatprep.mubr.bf16.mxu0 0
        %785 = vmatmul.mubr.bf16.gmra.mxu0 %v341
        %v786 = vpop.f32.mrf.mxu0
        %v787 = vadd.f32 0.0, %v786
        %v788 = vpop.f32.mrf.mxu0
        %v789 = vpop.f32.mrf.mxu0
        %v790 = vadd.f32 0.0, %v789
        %v791 = vpop.f32.mrf.mxu0
        %792 = vmatprep.mubr.bf16.mxu0 0
        %793 = vmatmul.mubr.bf16.gmra.mxu0 %v344
        %v794 = vpop.f32.mrf.mxu0
        %v795 = vadd.f32 0.0, %v794
        %v796 = vpop.f32.mrf.mxu0
        %v797 = vpop.f32.mrf.mxu0
        %v798 = vadd.f32 0.0, %v797
        %v799 = vpop.f32.mrf.mxu0
        %800 = vmatprep.mubr.bf16.mxu0 0
        %801 = vmatmul.mubr.bf16.gmra.mxu0 %v659
        %v802 = vpop.f32.mrf.mxu0
        %v803 = vadd.f32 0.0, %v802
        %v804 = vpop.f32.mrf.mxu0
        %v805 = vpop.f32.mrf.mxu0
        %v806 = vadd.f32 0.0, %v805
        %v807 = vpop.f32.mrf.mxu0
        %808 = vdwg.mxu0
        %v809 = vadd.f32 %v541, %v699
        %v810 = vadd.f32 %v544, %v702
        %v811 = vadd.f32 %v549, %v707
        %v812 = vadd.f32 %v552, %v710
        %v813 = vadd.f32 %v557, %v715
        %v814 = vadd.f32 %v560, %v718
        %v815 = vadd.f32 %v565, %v723
        %v816 = vadd.f32 %v568, %v726
        %v817 = vadd.f32 %v573, %v731
        %v818 = vadd.f32 %v576, %v734
        %v819 = vadd.f32 %v581, %v739
        %v820 = vadd.f32 %v584, %v742
        %v821 = vadd.f32 %v589, %v747
        %v822 = vadd.f32 %v592, %v750
        %v823 = vadd.f32 %v597, %v755
        %v824 = vadd.f32 %v600, %v758
        %v825 = vadd.f32 %v605, %v763
        %v826 = vadd.f32 %v608, %v766
        %v827 = vadd.f32 %v613, %v771
        %v828 = vadd.f32 %v616, %v774
        %v829 = vadd.f32 %v621, %v779
        %v830 = vadd.f32 %v624, %v782
        %v831 = vadd.f32 %v629, %v787
        %v832 = vadd.f32 %v632, %v790
        %v833 = vadd.f32 %v637, %v795
        %v834 = vadd.f32 %v640, %v798
        %v835 = vadd.f32 %v645, %v803
        %v836 = vadd.f32 %v648, %v806
        %v837 = vld [vmem:[%s2] sm:$0x3]
        %v838 = vunpack.c.l.bf16 %v837
        %v839 = vlaneseq
        %v840 = vshrl.u32 %v839, 7
        %v841 = vsub.s32 0, %v840
        %v842 = vrot.slane %v838, %v841
        %v843 = vmul.f32 %v842, %v809
        %v844 = vmul.f32 %v842, %v810
        %v845 = vmul.f32 %v842, %v811
        %v846 = vmul.f32 %v842, %v812
        %v847 = vmul.f32 %v842, %v813
        %v848 = vmul.f32 %v842, %v814
        %v849 = vmul.f32 %v842, %v815
        %v850 = vmul.f32 %v842, %v816
        %v851 = vmul.f32 %v842, %v817
        %v852 = vmul.f32 %v842, %v818
        %v853 = vmul.f32 %v842, %v819
        %v854 = vmul.f32 %v842, %v820
        %v855 = vmul.f32 %v842, %v821
        %v856 = vmul.f32 %v842, %v822
        %v857 = vmul.f32 %v842, %v823
        %v858 = vmul.f32 %v842, %v824
        %v859 = vmul.f32 %v842, %v825
        %v860 = vmul.f32 %v842, %v826
        %v861 = vmul.f32 %v842, %v827
        %v862 = vmul.f32 %v842, %v828
        %v863 = vmul.f32 %v842, %v829
        %v864 = vmul.f32 %v842, %v830
        %v865 = vmul.f32 %v842, %v831
        %v866 = vmul.f32 %v842, %v832
        %v867 = vmul.f32 %v842, %v833
        %v868 = vmul.f32 %v842, %v834
        %v869 = vmul.f32 %v842, %v835
        %v870 = vmul.f32 %v842, %v836
        %v871 = vrot.slane %v809, 1
        %v872 = vrot.slane %v810, 1
        %v873 = vrot.slane %v811, 1
        %v874 = vrot.slane %v812, 1
        %v875 = vrot.slane %v813, 1
        %v876 = vrot.slane %v814, 1
        %v877 = vrot.slane %v815, 1
        %v878 = vrot.slane %v816, 1
        %v879 = vrot.slane %v817, 1
        %v880 = vrot.slane %v818, 1
        %v881 = vrot.slane %v819, 1
        %v882 = vrot.slane %v820, 1
        %v883 = vrot.slane %v821, 1
        %v884 = vrot.slane %v822, 1
        %v885 = vrot.slane %v823, 1
        %v886 = vrot.slane %v824, 1
        %v887 = vrot.slane %v825, 1
        %v888 = vrot.slane %v826, 1
        %v889 = vrot.slane %v827, 1
        %v890 = vrot.slane %v828, 1
        %v891 = vrot.slane %v829, 1
        %v892 = vrot.slane %v830, 1
        %v893 = vrot.slane %v831, 1
        %v894 = vrot.slane %v832, 1
        %v895 = vrot.slane %v833, 1
        %v896 = vrot.slane %v834, 1
        %v897 = vrot.slane %v835, 1
        %v898 = vrot.slane %v836, 1
        %v899 = vlaneseq
        %v900 = vshrl.u32 %v899, 7
        %vm901 = vcmp.lt.s32.totalorder %v900, 7
        %v902 = vsel %vm901, %v897, %v898
        %v903 = vsel %vm901, %v896, %v897
        %v904 = vsel %vm901, %v895, %v896
        %v905 = vsel %vm901, %v894, %v895
        %v906 = vsel %vm901, %v893, %v894
        %v907 = vsel %vm901, %v892, %v893
        %v908 = vsel %vm901, %v891, %v892
        %v909 = vsel %vm901, %v890, %v891
        %v910 = vsel %vm901, %v889, %v890
        %v911 = vsel %vm901, %v888, %v889
        %v912 = vsel %vm901, %v887, %v888
        %v913 = vsel %vm901, %v886, %v887
        %v914 = vsel %vm901, %v885, %v886
        %v915 = vsel %vm901, %v884, %v885
        %v916 = vsel %vm901, %v883, %v884
        %v917 = vsel %vm901, %v882, %v883
        %v918 = vsel %vm901, %v881, %v882
        %v919 = vsel %vm901, %v880, %v881
        %v920 = vsel %vm901, %v879, %v880
        %v921 = vsel %vm901, %v878, %v879
        %v922 = vsel %vm901, %v877, %v878
        %v923 = vsel %vm901, %v876, %v877
        %v924 = vsel %vm901, %v875, %v876
        %v925 = vsel %vm901, %v874, %v875
        %v926 = vsel %vm901, %v873, %v874
        %v927 = vsel %vm901, %v872, %v873
        %v928 = vsel %vm901, %v871, %v872
        %v929 = vsel %vm901, %v898, %v871
        %v930 = vlaneseq
        %v931 = vshrl.u32 %v930, 7
        %v932 = vsub.s32 1, %v931
        %v933 = vrot.slane %v838, %v932
        %v934 = vmul.f32 %v933, %v928
        %v935 = vmul.f32 %v933, %v927
        %v936 = vmul.f32 %v933, %v926
        %v937 = vmul.f32 %v933, %v925
        %v938 = vmul.f32 %v933, %v924
        %v939 = vmul.f32 %v933, %v923
        %v940 = vmul.f32 %v933, %v922
        %v941 = vmul.f32 %v933, %v921
        %v942 = vmul.f32 %v933, %v920
        %v943 = vmul.f32 %v933, %v919
        %v944 = vmul.f32 %v933, %v918
        %v945 = vmul.f32 %v933, %v917
        %v946 = vmul.f32 %v933, %v916
        %v947 = vmul.f32 %v933, %v915
        %v948 = vmul.f32 %v933, %v914
        %v949 = vmul.f32 %v933, %v913
        %v950 = vmul.f32 %v933, %v912
        %v951 = vmul.f32 %v933, %v911
        %v952 = vmul.f32 %v933, %v910
        %v953 = vmul.f32 %v933, %v909
        %v954 = vmul.f32 %v933, %v908
        %v955 = vmul.f32 %v933, %v907
        %v956 = vmul.f32 %v933, %v906
        %v957 = vmul.f32 %v933, %v905
        %v958 = vmul.f32 %v933, %v904
        %v959 = vmul.f32 %v933, %v903
        %v960 = vmul.f32 %v933, %v902
        %v961 = vmul.f32 %v933, %v929
        %v962 = vadd.f32 %v843, %v934
        %v963 = vadd.f32 %v844, %v935
        %v964 = vadd.f32 %v845, %v936
        %v965 = vadd.f32 %v846, %v937
        %v966 = vadd.f32 %v847, %v938
        %v967 = vadd.f32 %v848, %v939
        %v968 = vadd.f32 %v849, %v940
        %v969 = vadd.f32 %v850, %v941
        %v970 = vadd.f32 %v851, %v942
        %v971 = vadd.f32 %v852, %v943
        %v972 = vadd.f32 %v853, %v944
        %v973 = vadd.f32 %v854, %v945
        %v974 = vadd.f32 %v855, %v946
        %v975 = vadd.f32 %v856, %v947
        %v976 = vadd.f32 %v857, %v948
        %v977 = vadd.f32 %v858, %v949
        %v978 = vadd.f32 %v859, %v950
        %v979 = vadd.f32 %v860, %v951
        %v980 = vadd.f32 %v861, %v952
        %v981 = vadd.f32 %v862, %v953
        %v982 = vadd.f32 %v863, %v954
        %v983 = vadd.f32 %v864, %v955
        %v984 = vadd.f32 %v865, %v956
        %v985 = vadd.f32 %v866, %v957
        %v986 = vadd.f32 %v867, %v958
        %v987 = vadd.f32 %v868, %v959
        %v988 = vadd.f32 %v869, %v960
        %v989 = vadd.f32 %v870, %v961
        %v990 = vrot.slane %v809, 2
        %v991 = vrot.slane %v810, 2
        %v992 = vrot.slane %v811, 2
        %v993 = vrot.slane %v812, 2
        %v994 = vrot.slane %v813, 2
        %v995 = vrot.slane %v814, 2
        %v996 = vrot.slane %v815, 2
        %v997 = vrot.slane %v816, 2
        %v998 = vrot.slane %v817, 2
        %v999 = vrot.slane %v818, 2
        %v1000 = vrot.slane %v819, 2
        %v1001 = vrot.slane %v820, 2
        %v1002 = vrot.slane %v821, 2
        %v1003 = vrot.slane %v822, 2
        %v1004 = vrot.slane %v823, 2
        %v1005 = vrot.slane %v824, 2
        %v1006 = vrot.slane %v825, 2
        %v1007 = vrot.slane %v826, 2
        %v1008 = vrot.slane %v827, 2
        %v1009 = vrot.slane %v828, 2
        %v1010 = vrot.slane %v829, 2
        %v1011 = vrot.slane %v830, 2
        %v1012 = vrot.slane %v831, 2
        %v1013 = vrot.slane %v832, 2
        %v1014 = vrot.slane %v833, 2
        %v1015 = vrot.slane %v834, 2
        %v1016 = vrot.slane %v835, 2
        %v1017 = vrot.slane %v836, 2
        %vm1018 = vcmp.lt.s32.totalorder %v900, 6
        %v1019 = vsel %vm1018, %v1016, %v1017
        %v1020 = vsel %vm1018, %v1015, %v1016
        %v1021 = vsel %vm1018, %v1014, %v1015
        %v1022 = vsel %vm1018, %v1013, %v1014
        %v1023 = vsel %vm1018, %v1012, %v1013
        %v1024 = vsel %vm1018, %v1011, %v1012
        %v1025 = vsel %vm1018, %v1010, %v1011
        %v1026 = vsel %vm1018, %v1009, %v1010
        %v1027 = vsel %vm1018, %v1008, %v1009
        %v1028 = vsel %vm1018, %v1007, %v1008
        %v1029 = vsel %vm1018, %v1006, %v1007
        %v1030 = vsel %vm1018, %v1005, %v1006
        %v1031 = vsel %vm1018, %v1004, %v1005
        %v1032 = vsel %vm1018, %v1003, %v1004
        %v1033 = vsel %vm1018, %v1002, %v1003
        %v1034 = vsel %vm1018, %v1001, %v1002
        %v1035 = vsel %vm1018, %v1000, %v1001
        %v1036 = vsel %vm1018, %v999, %v1000
        %v1037 = vsel %vm1018, %v998, %v999
        %v1038 = vsel %vm1018, %v997, %v998
        %v1039 = vsel %vm1018, %v996, %v997
        %v1040 = vsel %vm1018, %v995, %v996
        %v1041 = vsel %vm1018, %v994, %v995
        %v1042 = vsel %vm1018, %v993, %v994
        %v1043 = vsel %vm1018, %v992, %v993
        %v1044 = vsel %vm1018, %v991, %v992
        %v1045 = vsel %vm1018, %v990, %v991
        %v1046 = vsel %vm1018, %v1017, %v990
        %v1047 = vlaneseq
        %v1048 = vshrl.u32 %v1047, 7
        %v1049 = vsub.s32 2, %v1048
        %v1050 = vrot.slane %v838, %v1049
        %v1051 = vmul.f32 %v1050, %v1045
        %v1052 = vmul.f32 %v1050, %v1044
        %v1053 = vmul.f32 %v1050, %v1043
        %v1054 = vmul.f32 %v1050, %v1042
        %v1055 = vmul.f32 %v1050, %v1041
        %v1056 = vmul.f32 %v1050, %v1040
        %v1057 = vmul.f32 %v1050, %v1039
        %v1058 = vmul.f32 %v1050, %v1038
        %v1059 = vmul.f32 %v1050, %v1037
        %v1060 = vmul.f32 %v1050, %v1036
        %v1061 = vmul.f32 %v1050, %v1035
        %v1062 = vmul.f32 %v1050, %v1034
        %v1063 = vmul.f32 %v1050, %v1033
        %v1064 = vmul.f32 %v1050, %v1032
        %v1065 = vmul.f32 %v1050, %v1031
        %v1066 = vmul.f32 %v1050, %v1030
        %v1067 = vmul.f32 %v1050, %v1029
        %v1068 = vmul.f32 %v1050, %v1028
        %v1069 = vmul.f32 %v1050, %v1027
        %v1070 = vmul.f32 %v1050, %v1026
        %v1071 = vmul.f32 %v1050, %v1025
        %v1072 = vmul.f32 %v1050, %v1024
        %v1073 = vmul.f32 %v1050, %v1023
        %v1074 = vmul.f32 %v1050, %v1022
        %v1075 = vmul.f32 %v1050, %v1021
        %v1076 = vmul.f32 %v1050, %v1020
        %v1077 = vmul.f32 %v1050, %v1019
        %v1078 = vmul.f32 %v1050, %v1046
        %v1079 = vadd.f32 %v962, %v1051
        %v1080 = vadd.f32 %v963, %v1052
        %v1081 = vadd.f32 %v964, %v1053
        %v1082 = vadd.f32 %v965, %v1054
        %v1083 = vadd.f32 %v966, %v1055
        %v1084 = vadd.f32 %v967, %v1056
        %v1085 = vadd.f32 %v968, %v1057
        %v1086 = vadd.f32 %v969, %v1058
        %v1087 = vadd.f32 %v970, %v1059
        %v1088 = vadd.f32 %v971, %v1060
        %v1089 = vadd.f32 %v972, %v1061
        %v1090 = vadd.f32 %v973, %v1062
        %v1091 = vadd.f32 %v974, %v1063
        %v1092 = vadd.f32 %v975, %v1064
        %v1093 = vadd.f32 %v976, %v1065
        %v1094 = vadd.f32 %v977, %v1066
        %v1095 = vadd.f32 %v978, %v1067
        %v1096 = vadd.f32 %v979, %v1068
        %v1097 = vadd.f32 %v980, %v1069
        %v1098 = vadd.f32 %v981, %v1070
        %v1099 = vadd.f32 %v982, %v1071
        %v1100 = vadd.f32 %v983, %v1072
        %v1101 = vadd.f32 %v984, %v1073
        %v1102 = vadd.f32 %v985, %v1074
        %v1103 = vadd.f32 %v986, %v1075
        %v1104 = vadd.f32 %v987, %v1076
        %v1105 = vadd.f32 %v988, %v1077
        %v1106 = vadd.f32 %v989, %v1078
        %v1107 = vpack.c.bf16 %v1080, %v1079
        %v1108 = vpack.c.bf16 %v1082, %v1081
        %v1109 = vpack.c.bf16 %v1084, %v1083
        %v1110 = vpack.c.bf16 %v1086, %v1085
        %v1111 = vpack.c.bf16 %v1088, %v1087
        %v1112 = vpack.c.bf16 %v1090, %v1089
        %v1113 = vpack.c.bf16 %v1092, %v1091
        %v1114 = vpack.c.bf16 %v1094, %v1093
        %v1115 = vpack.c.bf16 %v1096, %v1095
        %v1116 = vpack.c.bf16 %v1098, %v1097
        %v1117 = vpack.c.bf16 %v1100, %v1099
        %v1118 = vpack.c.bf16 %v1102, %v1101
        %v1119 = vpack.c.bf16 %v1104, %v1103
        %v1120 = vpack.c.bf16 %v1106, %v1105
        %v1121 = vld [vmem:[%s3] sm:$0xf]
        %v1122 = vld [vmem:[%s3 + $0x4] sm:$0xf]
        %v1123 = vld [vmem:[%s3 + $0x8] sm:$0xf]
        %v1124 = vld [vmem:[%s3 + $0xc] sm:$0xf]
        %v1125 = vld [vmem:[%s3 + $0x10] sm:$0xf]
        %v1126 = vld [vmem:[%s3 + $0x14] sm:$0xf]
        %v1127 = vld [vmem:[%s3 + $0x18] sm:$0xf]
        %v1128 = vld [vmem:[%s3 + $0x1c] sm:$0xf]
        %v1129 = vld [vmem:[%s3 + $0x20] sm:$0xf]
        %v1130 = vld [vmem:[%s3 + $0x24] sm:$0xf]
        %v1131 = vld [vmem:[%s3 + $0x28] sm:$0xf]
        %v1132 = vld [vmem:[%s3 + $0x2c] sm:$0xf]
        %v1133 = vld [vmem:[%s3 + $0x30] sm:$0xf]
        %v1134 = vld [vmem:[%s3 + $0x34] sm:$0xf]
        %v1135 = vld [vmem:[%s3 + $0x38] sm:$0xf]
        %v1136 = vld [vmem:[%s3 + $0x3c] sm:$0xf]
        %v1153 = vunpack.c.l.b16 %v1121
        %v1154 = vunpack.c.l.b16 %v1122
        %v1155 = vunpack.c.l.b16 %v1123
        %v1156 = vunpack.c.l.b16 %v1124
        %v1157 = vunpack.c.l.b16 %v1125
        %v1158 = vunpack.c.l.b16 %v1126
        %v1159 = vunpack.c.l.b16 %v1127
        %v1160 = vunpack.c.l.b16 %v1128
        %v1161 = vunpack.c.l.b16 %v1129
        %v1162 = vunpack.c.l.b16 %v1130
        %v1163 = vunpack.c.l.b16 %v1131
        %v1164 = vunpack.c.l.b16 %v1132
        %v1165 = vunpack.c.l.b16 %v1133
        %v1166 = vunpack.c.l.b16 %v1134
        %v1167 = vunpack.c.l.b16 %v1135
        %v1168 = vunpack.c.l.b16 %v1136
        %v1169 = vpack.c.b16 %v1154, %v1153
        %v1170 = vpack.c.b16 %v1156, %v1155
        %v1171 = vpack.c.b16 %v1158, %v1157
        %v1172 = vpack.c.b16 %v1160, %v1159
        %v1173 = vpack.c.b16 %v1162, %v1161
        %v1174 = vpack.c.b16 %v1164, %v1163
        %v1175 = vpack.c.b16 %v1166, %v1165
        %v1176 = vpack.c.b16 %v1168, %v1167
        %1185 = vmatprep.subr.bf16.mxu0 0
        %1186 = vmatpush1.bf16.msra.mxu0 %v1176
        %1187 = vmatprep.subr.bf16.mxu0 0
        %1188 = vmatpush1.bf16.msra.mxu0 %v1175
        %1189 = vmatprep.subr.bf16.mxu0 0
        %1190 = vmatpush1.bf16.msra.mxu0 %v1174
        %1191 = vmatprep.subr.bf16.mxu0 0
        %1192 = vmatpush1.bf16.msra.mxu0 %v1173
        %1193 = vmatprep.subr.bf16.mxu0 0
        %1194 = vmatpush1.bf16.msra.mxu0 %v1172
        %1195 = vmatprep.subr.bf16.mxu0 0
        %1196 = vmatpush1.bf16.msra.mxu0 %v1171
        %1197 = vmatprep.subr.bf16.mxu0 0
        %1198 = vmatpush1.bf16.msra.mxu0 %v1170
        %1199 = vmatprep.subr.bf16.mxu0 0
        %1200 = vmatpush1.bf16.msra.mxu0 %v1169
        %1201 = vmatprep.subr.bf16.mxu0 0
        %1202 = vmatpush2.bf16.msra.mxu0 0
        %1203 = vmatprep.subr.bf16.mxu0 0
        %1204 = vmatpush2.bf16.msra.mxu0 0
        %1205 = vmatprep.subr.bf16.mxu0 0
        %1206 = vmatpush2.bf16.msra.mxu0 0
        %1207 = vmatprep.subr.bf16.mxu0 0
        %1208 = vmatpush2.bf16.msra.mxu0 0
        %1209 = vmatprep.subr.bf16.mxu0 0
        %1210 = vmatpush2.bf16.msra.mxu0 0
        %1211 = vmatprep.subr.bf16.mxu0 0
        %1212 = vmatpush2.bf16.msra.mxu0 0
        %1213 = vmatprep.subr.bf16.mxu0 0
        %1214 = vmatpush2.bf16.msra.mxu0 0
        %1215 = vmatprep.subr.bf16.mxu0 0
        %1216 = vmatpush2.bf16.msra.mxu0 0
        %1217 = vmatprep.mubr.bf16.mxu0 0
        %1218 = vmatmul.mubr.bf16.gmra.mxu0 %v1107
        %v1219 = vpop.f32.mrf.mxu0
        %v1220 = vadd.f32 0.0, %v1219
        %v1221 = vpop.f32.mrf.mxu0
        %v1222 = vpop.f32.mrf.mxu0
        %v1223 = vadd.f32 0.0, %v1222
        %v1224 = vpop.f32.mrf.mxu0
        %1225 = vmatprep.mubr.bf16.mxu0 0
        %1226 = vmatmul.mubr.bf16.gmra.mxu0 %v1108
        %v1227 = vpop.f32.mrf.mxu0
        %v1228 = vadd.f32 0.0, %v1227
        %v1229 = vpop.f32.mrf.mxu0
        %v1230 = vpop.f32.mrf.mxu0
        %v1231 = vadd.f32 0.0, %v1230
        %v1232 = vpop.f32.mrf.mxu0
        %1233 = vmatprep.mubr.bf16.mxu0 0
        %1234 = vmatmul.mubr.bf16.gmra.mxu0 %v1109
        %v1235 = vpop.f32.mrf.mxu0
        %v1236 = vadd.f32 0.0, %v1235
        %v1237 = vpop.f32.mrf.mxu0
        %v1238 = vpop.f32.mrf.mxu0
        %v1239 = vadd.f32 0.0, %v1238
        %v1240 = vpop.f32.mrf.mxu0
        %1241 = vmatprep.mubr.bf16.mxu0 0
        %1242 = vmatmul.mubr.bf16.gmra.mxu0 %v1110
        %v1243 = vpop.f32.mrf.mxu0
        %v1244 = vadd.f32 0.0, %v1243
        %v1245 = vpop.f32.mrf.mxu0
        %v1246 = vpop.f32.mrf.mxu0
        %v1247 = vadd.f32 0.0, %v1246
        %v1248 = vpop.f32.mrf.mxu0
        %1249 = vmatprep.mubr.bf16.mxu0 0
        %1250 = vmatmul.mubr.bf16.gmra.mxu0 %v1111
        %v1251 = vpop.f32.mrf.mxu0
        %v1252 = vadd.f32 0.0, %v1251
        %v1253 = vpop.f32.mrf.mxu0
        %v1254 = vpop.f32.mrf.mxu0
        %v1255 = vadd.f32 0.0, %v1254
        %v1256 = vpop.f32.mrf.mxu0
        %1257 = vmatprep.mubr.bf16.mxu0 0
        %1258 = vmatmul.mubr.bf16.gmra.mxu0 %v1112
        %v1259 = vpop.f32.mrf.mxu0
        %v1260 = vadd.f32 0.0, %v1259
        %v1261 = vpop.f32.mrf.mxu0
        %v1262 = vpop.f32.mrf.mxu0
        %v1263 = vadd.f32 0.0, %v1262
        %v1264 = vpop.f32.mrf.mxu0
        %1265 = vmatprep.mubr.bf16.mxu0 0
        %1266 = vmatmul.mubr.bf16.gmra.mxu0 %v1113
        %v1267 = vpop.f32.mrf.mxu0
        %v1268 = vadd.f32 0.0, %v1267
        %v1269 = vpop.f32.mrf.mxu0
        %v1270 = vpop.f32.mrf.mxu0
        %v1271 = vadd.f32 0.0, %v1270
        %v1272 = vpop.f32.mrf.mxu0
        %1273 = vmatprep.mubr.bf16.mxu0 0
        %1274 = vmatmul.mubr.bf16.gmra.mxu0 %v1114
        %v1275 = vpop.f32.mrf.mxu0
        %v1276 = vadd.f32 0.0, %v1275
        %v1277 = vpop.f32.mrf.mxu0
        %v1278 = vpop.f32.mrf.mxu0
        %v1279 = vadd.f32 0.0, %v1278
        %v1280 = vpop.f32.mrf.mxu0
        %1281 = vmatprep.mubr.bf16.mxu0 0
        %1282 = vmatmul.mubr.bf16.gmra.mxu0 %v1115
        %v1283 = vpop.f32.mrf.mxu0
        %v1284 = vadd.f32 0.0, %v1283
        %v1285 = vpop.f32.mrf.mxu0
        %v1286 = vpop.f32.mrf.mxu0
        %v1287 = vadd.f32 0.0, %v1286
        %v1288 = vpop.f32.mrf.mxu0
        %1289 = vmatprep.mubr.bf16.mxu0 0
        %1290 = vmatmul.mubr.bf16.gmra.mxu0 %v1116
        %v1291 = vpop.f32.mrf.mxu0
        %v1292 = vadd.f32 0.0, %v1291
        %v1293 = vpop.f32.mrf.mxu0
        %v1294 = vpop.f32.mrf.mxu0
        %v1295 = vadd.f32 0.0, %v1294
        %v1296 = vpop.f32.mrf.mxu0
        %1297 = vmatprep.mubr.bf16.mxu0 0
        %1298 = vmatmul.mubr.bf16.gmra.mxu0 %v1117
        %v1299 = vpop.f32.mrf.mxu0
        %v1300 = vadd.f32 0.0, %v1299
        %v1301 = vpop.f32.mrf.mxu0
        %v1302 = vpop.f32.mrf.mxu0
        %v1303 = vadd.f32 0.0, %v1302
        %v1304 = vpop.f32.mrf.mxu0
        %1305 = vmatprep.mubr.bf16.mxu0 0
        %1306 = vmatmul.mubr.bf16.gmra.mxu0 %v1118
        %v1307 = vpop.f32.mrf.mxu0
        %v1308 = vadd.f32 0.0, %v1307
        %v1309 = vpop.f32.mrf.mxu0
        %v1310 = vpop.f32.mrf.mxu0
        %v1311 = vadd.f32 0.0, %v1310
        %v1312 = vpop.f32.mrf.mxu0
        %1313 = vmatprep.mubr.bf16.mxu0 0
        %1314 = vmatmul.mubr.bf16.gmra.mxu0 %v1119
        %v1315 = vpop.f32.mrf.mxu0
        %v1316 = vadd.f32 0.0, %v1315
        %v1317 = vpop.f32.mrf.mxu0
        %v1318 = vpop.f32.mrf.mxu0
        %v1319 = vadd.f32 0.0, %v1318
        %v1320 = vpop.f32.mrf.mxu0
        %1321 = vmatprep.mubr.bf16.mxu0 0
        %1322 = vmatmul.mubr.bf16.gmra.mxu0 %v1120
        %v1323 = vpop.f32.mrf.mxu0
        %v1324 = vadd.f32 0.0, %v1323
        %v1325 = vpop.f32.mrf.mxu0
        %v1326 = vpop.f32.mrf.mxu0
        %v1327 = vadd.f32 0.0, %v1326
        %v1328 = vpop.f32.mrf.mxu0
        %1329 = vdwg.mxu0
        %v1330 = vpack.c.bf16 %v1223, %v1220
        %v1331 = vpack.c.bf16 %v1231, %v1228
        %v1332 = vpack.c.bf16 %v1239, %v1236
        %v1333 = vpack.c.bf16 %v1247, %v1244
        %v1334 = vpack.c.bf16 %v1255, %v1252
        %v1335 = vpack.c.bf16 %v1263, %v1260
        %v1336 = vpack.c.bf16 %v1271, %v1268
        %v1337 = vpack.c.bf16 %v1279, %v1276
        %v1338 = vpack.c.bf16 %v1287, %v1284
        %v1339 = vpack.c.bf16 %v1295, %v1292
        %v1340 = vpack.c.bf16 %v1303, %v1300
        %v1341 = vpack.c.bf16 %v1311, %v1308
        %v1342 = vpack.c.bf16 %v1319, %v1316
        %v1343 = vpack.c.bf16 %v1327, %v1324
        %v1358 = vunpack.c.l.b16 %v1330
        %v1359 = vunpack.c.h.b16 %v1330
        %v1360 = vunpack.c.l.b16 %v1331
        %v1361 = vunpack.c.h.b16 %v1331
        %v1362 = vunpack.c.l.b16 %v1332
        %v1363 = vunpack.c.h.b16 %v1332
        %v1364 = vunpack.c.l.b16 %v1333
        %v1365 = vunpack.c.h.b16 %v1333
        %v1366 = vunpack.c.l.b16 %v1334
        %v1367 = vunpack.c.h.b16 %v1334
        %v1368 = vunpack.c.l.b16 %v1335
        %v1369 = vunpack.c.h.b16 %v1335
        %v1370 = vunpack.c.l.b16 %v1336
        %v1371 = vunpack.c.h.b16 %v1336
        %v1372 = vunpack.c.l.b16 %v1337
        %v1373 = vunpack.c.h.b16 %v1337
        %v1374 = vunpack.c.l.b16 %v1338
        %v1375 = vunpack.c.h.b16 %v1338
        %v1376 = vunpack.c.l.b16 %v1339
        %v1377 = vunpack.c.h.b16 %v1339
        %v1378 = vunpack.c.l.b16 %v1340
        %v1379 = vunpack.c.h.b16 %v1340
        %v1380 = vunpack.c.l.b16 %v1341
        %v1381 = vunpack.c.h.b16 %v1341
        %v1382 = vunpack.c.l.b16 %v1342
        %v1383 = vunpack.c.h.b16 %v1342
        %v1384 = vunpack.c.l.b16 %v1343
        %v1385 = vunpack.c.h.b16 %v1343
        %v1386 = vpack.c.b16 %v1358, %v1358
        %v1387 = vpack.c.b16 %v1359, %v1359
        %v1388 = vpack.c.b16 %v1360, %v1360
        %v1389 = vpack.c.b16 %v1361, %v1361
        %v1390 = vpack.c.b16 %v1362, %v1362
        %v1391 = vpack.c.b16 %v1363, %v1363
        %v1392 = vpack.c.b16 %v1364, %v1364
        %v1393 = vpack.c.b16 %v1365, %v1365
        %v1394 = vpack.c.b16 %v1366, %v1366
        %v1395 = vpack.c.b16 %v1367, %v1367
        %v1396 = vpack.c.b16 %v1368, %v1368
        %v1397 = vpack.c.b16 %v1369, %v1369
        %v1398 = vpack.c.b16 %v1370, %v1370
        %v1399 = vpack.c.b16 %v1371, %v1371
        %v1400 = vpack.c.b16 %v1372, %v1372
        %v1401 = vpack.c.b16 %v1373, %v1373
        %v1402 = vpack.c.b16 %v1374, %v1374
        %v1403 = vpack.c.b16 %v1375, %v1375
        %v1404 = vpack.c.b16 %v1376, %v1376
        %v1405 = vpack.c.b16 %v1377, %v1377
        %v1406 = vpack.c.b16 %v1378, %v1378
        %v1407 = vpack.c.b16 %v1379, %v1379
        %v1408 = vpack.c.b16 %v1380, %v1380
        %v1409 = vpack.c.b16 %v1381, %v1381
        %v1410 = vpack.c.b16 %v1382, %v1382
        %v1411 = vpack.c.b16 %v1383, %v1383
        %v1412 = vpack.c.b16 %v1384, %v1384
        %v1413 = vpack.c.b16 %v1385, %v1385
        %1442 = vst [vmem:[%s190] sm:$0xf] %v1386
        %1443 = vst [vmem:[%s190 + $0x4] sm:$0xf] %v1387
        %1444 = vst [vmem:[%s190 + $0x8] sm:$0xf] %v1388
        %1445 = vst [vmem:[%s190 + $0xc] sm:$0xf] %v1389
        %1446 = vst [vmem:[%s190 + $0x10] sm:$0xf] %v1390
        %1447 = vst [vmem:[%s190 + $0x14] sm:$0xf] %v1391
        %1448 = vst [vmem:[%s190 + $0x18] sm:$0xf] %v1392
        %1449 = vst [vmem:[%s190 + $0x1c] sm:$0xf] %v1393
        %1450 = vst [vmem:[%s190 + $0x20] sm:$0xf] %v1394
        %1451 = vst [vmem:[%s190 + $0x24] sm:$0xf] %v1395
        %1452 = vst [vmem:[%s190 + $0x28] sm:$0xf] %v1396
        %1453 = vst [vmem:[%s190 + $0x2c] sm:$0xf] %v1397
        %1454 = vst [vmem:[%s190 + $0x30] sm:$0xf] %v1398
        %1455 = vst [vmem:[%s190 + $0x34] sm:$0xf] %v1399
        %1456 = vst [vmem:[%s190 + $0x38] sm:$0xf] %v1400
        %1457 = vst [vmem:[%s190 + $0x3c] sm:$0xf] %v1401
        %1458 = vst [vmem:[%s190 + $0x40] sm:$0xf] %v1402
        %1459 = vst [vmem:[%s190 + $0x44] sm:$0xf] %v1403
        %1460 = vst [vmem:[%s190 + $0x48] sm:$0xf] %v1404
        %1461 = vst [vmem:[%s190 + $0x4c] sm:$0xf] %v1405
        %1462 = vst [vmem:[%s190 + $0x50] sm:$0xf] %v1406
        %1463 = vst [vmem:[%s190 + $0x54] sm:$0xf] %v1407
        %1464 = vst [vmem:[%s190 + $0x58] sm:$0xf] %v1408
        %1465 = vst [vmem:[%s190 + $0x5c] sm:$0xf] %v1409
        %1466 = vst [vmem:[%s190 + $0x60] sm:$0xf] %v1410
        %1467 = vst [vmem:[%s190 + $0x64] sm:$0xf] %v1411
        %1468 = vst [vmem:[%s190 + $0x68] sm:$0xf] %v1412
        %1469 = vst [vmem:[%s190 + $0x6c] sm:$0xf] %v1413
        %s1470 = sand.u32 %s115, 1
        %s1471 = scalar_lea.sflag [#allocation3], %s1470
        %s1472 = sand.u32 %s115, 1
        %s1473 = smul.addr %s1472, 112
        %s1474 = scalar_lea.vmem [#allocation2], %s1473
        // Predicated region
        $region37: #{tpu_custom_call.1} parent=35 // pred_check
          %p1475 = pneg %p125
        $region38: #{tpu_custom_call.1} parent=35 // pred_check_branch
          %1477 = sbr.rel (%p1475) target = $region40
        $region39: #{tpu_custom_call.1} parent=35 // pred_region
          %s1478 = smul.u32 28, %s18
          %s1480 = ssub.s32 1792, 1792
          %1481 = vsyncadd %s1471, %s1480
          %s1482 = smul.addr %s1478, 64
          %s1483 = scalar_lea.hbm %s4, %s1482
          %s1484 = sshll.u32 %s1474, 4
          %s1485 = int_to_ptr.vmem [resolvable:$true] %s1484
          %1490 = dma.vmem_to_hbm [thread:$0]  %s1485, 1792, %s1483, %s1471, 64, 64, 4
        $region40: #{tpu_custom_call.1} parent=35 // pred_fallthru
          _
      $region36: #{tpu_custom_call.1} parent=5 // pred_fallthru
        _
      %p1491 = scmp.le.s32.totalorder 2, %s13
      // Predicated region
      $region41: #{tpu_custom_call.1} parent=5 // pred_check
        %p1492 = pneg %p1491
      $region42: #{tpu_custom_call.1} parent=5 // pred_check_branch
        %1494 = sbr.rel (%p1492) target = $region44
      $region43: #{tpu_custom_call.1} parent=5 // pred_region
        %s1495 = ssub.s32 %s13, 2
        // Predicated region
        $region45: #{tpu_custom_call.1} parent=43 // pred_check
          %p1496 = pneg %p131
        $region46: #{tpu_custom_call.1} parent=43 // pred_check_branch
          %1498 = sbr.rel (%p1496) target = $region48
        $region47: #{tpu_custom_call.1} parent=43 // pred_region
          %s1499 = sand.u32 %s116, 1
          %s1500 = scalar_lea.sflag [#allocation3], %s1499
          %s1501 = sand.u32 %s116, 1
          %s1502 = smul.addr %s1501, 112
          %s1503 = scalar_lea.vmem [#allocation2], %s1502
          %1504 = dma.done %s1500, 1792
        $region48: #{tpu_custom_call.1} parent=43 // pred_fallthru
          _
      $region44: #{tpu_custom_call.1} parent=5 // pred_fallthru
        _
    $region6: #{tpu_custom_call.1} parent=1 // loop_footer
      %s17 = sadd.s32 1, %s13
    $region7: #{tpu_custom_call.1} parent=1 // loop_footer_branch
      %12 = sbr.rel target = $region3
    $region8: #{tpu_custom_call.1} parent=1 // loop_exit
      _
    %1505 = vsyncpa [#allocation3], 1
    %s1506 = scalar_lea.sflag [#allocation3], 1
    %1507 = vsyncpa %s1506, 1

</llo_original>
